<compile_context>
chip_gen: v6e
topology: v6e:2x2x1
jax: 0.10.0
libtpu: 0.0.40
codegen_flags: <defaults>
</compile_context>

<pallas_src>
import functools

import jax
import jax.numpy as jnp
from jax.experimental import pallas as pl
from jax.experimental.pallas import tpu as pltpu


# ----------------------------- configuration -------------------------------
NUM_CLASS = 10
EMBEDDING_DIM = 32
COVARIATE_SIZE = 4
HIDDEN = 128
NUM_LAYERS = 3
INPUT_SIZE = 1 + COVARIATE_SIZE + EMBEDDING_DIM   # 37
IN_PAD = HIDDEN                                    # layer-0 features zero-padded to 128 lanes
HEAD_PAD = 128                                     # lane-dense [mu | presigma | 0...] head
BATCH = 4


# ------------------------------- kernel ------------------------------------
def deepar_kernel(x_ref, h0_ref, c0_ref, w_ref, b_ref, wh_ref, bh_ref,
                  out_ref, hout_ref, cout_ref, *, t_total, t_chunk):
    """One time-chunk per grid step: up to `t_chunk` LSTM decode steps + fused head.

    x_ref    : (TC, BT, IN_PAD) bf16   this chunk's features (padded to 128 lanes)
    h0_ref   : (L, BT, H) f32          initial hidden state for this batch block
    c0_ref   : (L, BT, H) f32          initial cell state
    w_ref    : (L, 2H, 4H) bf16        fused [W_ih^T (row-padded) ; W_hh^T] per layer
    b_ref    : (L, 1, 4H) f32          b_ih + b_hh
    wh_ref   : (3H, 128) bf16          folded [mu | presigma] head, lane-padded to 128
    bh_ref   : (1, 128) f32            [b_mu, b_presigma, 0, ...]
    out_ref  : (TC, BT, 128) f32       col 0 = mu, col 1 = presigma (raw)
    hout_ref : (L, BT, H) f32          VMEM-resident recurrent state (constant over chunks)
    cout_ref : (L, BT, H) f32
    """
    H = HIDDEN
    bt = hout_ref.shape[1]

    # Initialize the VMEM-resident state once per batch block (first chunk).
    @pl.when(pl.program_id(1) == 0)
    def _():
        hout_ref[...] = h0_ref[...]
        cout_ref[...] = c0_ref[...]

    # Hoisted out of the time loop (JAX does not CSE broadcast_in_dim).
    bias_bc = [jnp.broadcast_to(b_ref[l], (bt, 4 * H)) for l in range(NUM_LAYERS)]
    head_b = jnp.broadcast_to(bh_ref[...], (bt, HEAD_PAD))

    # Number of valid steps in this chunk (last chunk may be partial).
    chunk = pl.program_id(1)
    n_valid = jnp.minimum(t_chunk, t_total - chunk * t_chunk)

    @pl.loop(0, n_valid)
    def _(t):
        layer_in = x_ref[t]                                   # (BT, IN_PAD) bf16
        h_bf = []
        for l in range(NUM_LAYERS):                           # static unroll, L = 3
            h_l = hout_ref[l]                                 # previous step's h, f32
            c_l = cout_ref[l]
            # Fused input/hidden matmul: (BT, 2H) @ (2H, 4H), bf16 operands, f32 acc.
            xh = jnp.concatenate([layer_in, h_l.astype(jnp.bfloat16)], axis=1)
            gates = jnp.dot(xh, w_ref[l],
                            preferred_element_type=jnp.float32) + bias_bc[l]
            # PyTorch gate order: i, f, g, o
            i_g = jax.nn.sigmoid(gates[:, 0:H])
            f_g = jax.nn.sigmoid(gates[:, H:2 * H])
            g_g = jnp.tanh(gates[:, 2 * H:3 * H])
            o_g = jax.nn.sigmoid(gates[:, 3 * H:4 * H])
            c_new = f_g * c_l + i_g * g_g
            h_new = o_g * jnp.tanh(c_new)
            hout_ref[l] = h_new
            cout_ref[l] = c_new
            h_new_bf = h_new.astype(jnp.bfloat16)             # cast once, reuse twice
            h_bf.append(h_new_bf)
            layer_in = h_new_bf

        # Single head matmul per step: [h1|h2|h3] @ (3H, 128) — col0 = mu, col1 = presigma.
        hcat = jnp.concatenate(h_bf, axis=1)                  # (BT, 3H) bf16
        head = jnp.dot(hcat, wh_ref[...],
                       preferred_element_type=jnp.float32) + head_b
        out_ref[t] = head


# ------------------------------- wrappers -----------------------------------
@functools.partial(jax.jit, static_argnames=("time_chunk", "batch_blocks"))
def deepar_steps(target, covariates, idx, h, c, params, *, time_chunk=64,
                 batch_blocks=1):
    """Run T decode steps with the time loop fused inside one pallas_call.

    target (T, B), covariates (T, B, COV), idx (T, B) int32, h/c (L, B, H).
    Returns mu (T, B), sigma (T, B), h_out (L, B, H), c_out (L, B, H).
    """
    T, B = target.shape
    BP = max(8, ((B + 7) // 8) * 8)                        # pad batch to a sublane tile
    assert BP % batch_blocks == 0 and (BP // batch_blocks) % 8 == 0
    BT = BP // batch_blocks                                # batch rows per grid block
    TC = min(time_chunk, T)                                # time steps per grid step
    NC = pl.cdiv(T, TC)
    Tp = NC * TC

    # glue: embedding gather + feature concat, padded to (Tp, BP, IN_PAD), bf16.
    embed = jnp.take(params["embedding"], idx, axis=0)                     # (T, B, E)
    x = jnp.concatenate([target[..., None], covariates, embed], axis=-1)   # (T, B, 37)
    x = jnp.pad(x, ((0, Tp - T), (0, BP - B), (0, IN_PAD - INPUT_SIZE)))
    x = x.astype(jnp.bfloat16)
    h_p = jnp.pad(h, ((0, 0), (0, BP - B), (0, 0)))
    c_p = jnp.pad(c, ((0, 0), (0, BP - B), (0, 0)))

    kernel = functools.partial(deepar_kernel, t_total=T, t_chunk=TC)
    const3 = lambda b, n: (0, 0, 0)

    out, h_out, c_out = pl.pallas_call(
        kernel,
        out_shape=(
            jax.ShapeDtypeStruct((Tp, BP, HEAD_PAD), jnp.float32),
            jax.ShapeDtypeStruct((NUM_LAYERS, BP, HIDDEN), jnp.float32),
            jax.ShapeDtypeStruct((NUM_LAYERS, BP, HIDDEN), jnp.float32),
        ),
        grid_spec=pltpu.PrefetchScalarGridSpec(
            num_scalar_prefetch=0,
            grid=(batch_blocks, NC),                       # (parallel batch, serial time)
            in_specs=[
                pl.BlockSpec((TC, BT, IN_PAD), lambda b, n: (n, b, 0)),          # x chunk
                pl.BlockSpec((NUM_LAYERS, BT, HIDDEN), lambda b, n: (0, b, 0)),  # h0
                pl.BlockSpec((NUM_LAYERS, BT, HIDDEN), lambda b, n: (0, b, 0)),  # c0
                pl.BlockSpec((NUM_LAYERS, 2 * HIDDEN, 4 * HIDDEN), const3),      # W fused
                pl.BlockSpec((NUM_LAYERS, 1, 4 * HIDDEN), const3),               # bias
                pl.BlockSpec((NUM_LAYERS * HIDDEN, HEAD_PAD), lambda b, n: (0, 0)),  # head W
                pl.BlockSpec((1, HEAD_PAD), lambda b, n: (0, 0)),                # head b
            ],
            out_specs=[
                pl.BlockSpec((TC, BT, HEAD_PAD), lambda b, n: (n, b, 0)),        # [mu|presig]
                pl.BlockSpec((NUM_LAYERS, BT, HIDDEN), lambda b, n: (0, b, 0)),  # h_out
                pl.BlockSpec((NUM_LAYERS, BT, HIDDEN), lambda b, n: (0, b, 0)),  # c_out
            ],
        ),
        compiler_params=pltpu.CompilerParams(
            dimension_semantics=("parallel", "arbitrary")),
    )(x, h_p, c_p, params["w_comb"], params["bias"], params["w_head"], params["b_head"])

    mu = out[:T, :B, 0]
    # softplus applied only to the kept presigma column, in glue (off the per-step
    # critical path, per perf review).
    sigma = jax.nn.softplus(out[:T, :B, 1])
    return mu, sigma, h_out[:, :B], c_out[:, :B]


def deepar_forward(target, covariates, idx, h, c, params):
    """Module-equivalent forward: target (1, B) -> mu (B,), sigma (B,), h, c."""
    mu, sigma, h_out, c_out = deepar_steps(target, covariates, idx, h, c, params)
    return mu[0], sigma[0], h_out, c_out


# ----------------------- deterministic parameter init -----------------------
def init_params(key):
    keys = jax.random.split(key, 17)
    kH = 1.0 / jnp.sqrt(HIDDEN)

    embedding = jax.random.normal(keys[0], (NUM_CLASS, EMBEDDING_DIM), jnp.float32)

    # PyTorch-style LSTM parameters.
    w_ih, w_hh, b_ih, b_hh = [], [], [], []
    for l in range(NUM_LAYERS):
        in_l = INPUT_SIZE if l == 0 else HIDDEN
        w_ih.append(jax.random.uniform(keys[1 + l], (4 * HIDDEN, in_l),
                                       jnp.float32, -kH, kH))
        w_hh.append(jax.random.uniform(keys[4 + l], (4 * HIDDEN, HIDDEN),
                                       jnp.float32, -kH, kH))
        bi = jax.random.uniform(keys[7 + l], (4 * HIDDEN,), jnp.float32, -kH, kH)
        bh = jax.random.uniform(keys[10 + l], (4 * HIDDEN,), jnp.float32, -kH, kH)
        # DeepAR.__init__: every LSTM bias gets [n//4:n//2] filled with 1.0
        bi = bi.at[HIDDEN:2 * HIDDEN].set(1.0)
        bh = bh.at[HIDDEN:2 * HIDDEN].set(1.0)
        b_ih.append(bi)
        b_hh.append(bh)

    # Fused per-layer weights: [W_ih^T (rows padded to H for layer 0) ; W_hh^T].
    w_layers = []
    for l in range(NUM_LAYERS):
        wih_t = w_ih[l].T                                               # (in_l, 4H)
        if l == 0:
            wih_t = jnp.pad(wih_t, ((0, IN_PAD - INPUT_SIZE), (0, 0)))  # (H, 4H)
        w_layers.append(jnp.concatenate([wih_t, w_hh[l].T], axis=0))    # (2H, 4H)
    w_comb = jnp.stack(w_layers, axis=0).astype(jnp.bfloat16)           # (L, 2H, 4H)
    bias = jnp.stack([(bi + bh)[None, :] for bi, bh in zip(b_ih, b_hh)], axis=0)

    # Output heads: nn.Linear(H*L, 1); h.permute(1,2,0).view(B, H*L) column is d*L + l,
    # while the kernel's [h1|h2|h3] concat column is l*H + d -> fold accordingly.
    kF = 1.0 / jnp.sqrt(HIDDEN * NUM_LAYERS)
    w_mu = jax.random.uniform(keys[13], (1, HIDDEN * NUM_LAYERS), jnp.float32, -kF, kF)
    b_mu = jax.random.uniform(keys[14], (1,), jnp.float32, -kF, kF)
    w_ps = jax.random.uniform(keys[15], (1, HIDDEN * NUM_LAYERS), jnp.float32, -kF, kF)
    b_ps = jax.random.uniform(keys[16], (1,), jnp.float32, -kF, kF)

    wmu_col = w_mu.reshape(HIDDEN, NUM_LAYERS).T.reshape(-1)            # (L*H,)
    wps_col = w_ps.reshape(HIDDEN, NUM_LAYERS).T.reshape(-1)
    w_head = jnp.zeros((NUM_LAYERS * HIDDEN, HEAD_PAD), jnp.float32)
    w_head = w_head.at[:, 0].set(wmu_col).at[:, 1].set(wps_col)
    w_head = w_head.astype(jnp.bfloat16)                                # (3H, 128)
    b_head = jnp.zeros((1, HEAD_PAD), jnp.float32)
    b_head = b_head.at[0, 0].set(b_mu[0]).at[0, 1].set(b_ps[0])         # (1, 128)

    params = {"embedding": embedding, "w_comb": w_comb, "bias": bias,
              "w_head": w_head, "b_head": b_head}
    # Reference keeps PyTorch layout; weights quantized to bf16 the same way the
    # kernel sees them, so the check isolates layout/semantics (not quantization).
    ref = {"embedding": embedding,
           "w_ih": [w.astype(jnp.bfloat16) for w in w_ih],
           "w_hh": [w.astype(jnp.bfloat16) for w in w_hh],
           "b_ih": b_ih, "b_hh": b_hh,
           "w_mu": w_mu.astype(jnp.bfloat16), "b_mu": b_mu,
           "w_ps": w_ps.astype(jnp.bfloat16), "b_ps": b_ps}
    return params, ref


# ------------------------- pure-JAX reference check --------------------------
def reference_steps(target, covariates, idx, h, c, ref):
    T, B = target.shape
    H = HIDDEN
    mus, sigmas = [], []
    for t in range(T):
        embed = jnp.take(ref["embedding"], idx[t], axis=0)
        x = jnp.concatenate([target[t][:, None], covariates[t], embed], axis=-1)
        layer_in = x
        hs, cs = [], []
        for l in range(NUM_LAYERS):
            gates = (jnp.dot(layer_in.astype(jnp.bfloat16), ref["w_ih"][l].T,
                             preferred_element_type=jnp.float32)
                     + jnp.dot(h[l].astype(jnp.bfloat16), ref["w_hh"][l].T,
                               preferred_element_type=jnp.float32)
                     + ref["b_ih"][l] + ref["b_hh"][l])
            i_g = jax.nn.sigmoid(gates[:, 0:H])
            f_g = jax.nn.sigmoid(gates[:, H:2 * H])
            g_g = jnp.tanh(gates[:, 2 * H:3 * H])
            o_g = jax.nn.sigmoid(gates[:, 3 * H:4 * H])
            c_new = f_g * c[l] + i_g * g_g
            h_new = o_g * jnp.tanh(c_new)
            hs.append(h_new)
            cs.append(c_new)
            layer_in = h_new
        h = jnp.stack(hs)
        c = jnp.stack(cs)
        # h.permute(1,2,0).contiguous().view(B, -1)
        h_perm = jnp.transpose(h, (1, 2, 0)).reshape(B, -1).astype(jnp.bfloat16)
        mu = jnp.dot(h_perm, ref["w_mu"].T,
                     preferred_element_type=jnp.float32)[:, 0] + ref["b_mu"][0]
        presig = jnp.dot(h_perm, ref["w_ps"].T,
                         preferred_element_type=jnp.float32)[:, 0] + ref["b_ps"][0]
        mus.append(mu)
        sigmas.append(jax.nn.softplus(presig))
    return jnp.stack(mus), jnp.stack(sigmas), h, c


# ---------------------------------- main -------------------------------------
if __name__ == "__main__":
    key = jax.random.PRNGKey(0)
    k_p, k_t, k_cov, k_idx, k_h, k_c = jax.random.split(key, 6)

    params, ref = init_params(k_p)

    h0 = 0.1 * jax.random.normal(k_h, (NUM_LAYERS, BATCH, HIDDEN), jnp.float32)
    c0 = 0.1 * jax.random.normal(k_c, (NUM_LAYERS, BATCH, HIDDEN), jnp.float32)

    # ---- module-equivalent single-step forward (T = 1) ----
    target = jax.random.normal(k_t, (1, BATCH), jnp.float32)
    covariates = jax.random.normal(k_cov, (1, BATCH, COVARIATE_SIZE), jnp.float32)
    idx = jax.random.randint(k_idx, (1, BATCH), 0, NUM_CLASS, jnp.int32)

    mu, sigma, h_out, c_out = deepar_forward(target, covariates, idx, h0, c0, params)
    jax.block_until_ready((mu, sigma, h_out, c_out))

    mu_r, sigma_r, h_r, c_r = reference_steps(target, covariates, idx, h0, c0, ref)
    assert jnp.allclose(mu, mu_r[0], atol=2e-3, rtol=2e-3), "mu mismatch"
    assert jnp.allclose(sigma, sigma_r[0], atol=2e-3, rtol=2e-3), "sigma mismatch"
    assert jnp.allclose(h_out, h_r, atol=2e-3, rtol=2e-3), "h mismatch"
    assert jnp.allclose(c_out, c_r, atol=2e-3, rtol=2e-3), "c mismatch"

    # ---- multi-step decode: two time chunks with a partial last chunk ----
    T2 = 6
    k_t2, k_cov2, k_idx2 = jax.random.split(jax.random.PRNGKey(1), 3)
    target2 = jax.random.normal(k_t2, (T2, BATCH), jnp.float32)
    cov2 = jax.random.normal(k_cov2, (T2, BATCH, COVARIATE_SIZE), jnp.float32)
    idx2 = jax.random.randint(k_idx2, (T2, BATCH), 0, NUM_CLASS, jnp.int32)

    mu2, sg2, h2, c2 = deepar_steps(target2, cov2, idx2, h0, c0, params, time_chunk=4)
    jax.block_until_ready((mu2, sg2, h2, c2))
    mu2_r, sg2_r, h2_r, c2_r = reference_steps(target2, cov2, idx2, h0, c0, ref)
    assert jnp.allclose(mu2, mu2_r, atol=2e-3, rtol=2e-3), "multi-step mu mismatch"
    assert jnp.allclose(sg2, sg2_r, atol=2e-3, rtol=2e-3), "multi-step sigma mismatch"
    assert jnp.allclose(h2, h2_r, atol=2e-3, rtol=2e-3), "multi-step h mismatch"
    assert jnp.allclose(c2, c2_r, atol=2e-3, rtol=2e-3), "multi-step c mismatch"

    # TODO(synk): the Monte-Carlo `forecast` sampling loop (torch.distributions.Normal,
    # DataLoader glue) is host-side in the original module and is not ported here; fold
    # the num_samples dimension into the batch (and set batch_blocks=2 on v7x) to run it
    # through this kernel efficiently.
    print("KERNEL_OK")
</pallas_src>

<mosaic_0001>
module attributes {stable_mosaic.version = 11 : i64} {
  func.func @deepar_kernel(%arg0: i32, %arg1: i32, %arg2: memref<1x8x128xbf16, #tpu.memory_space<vmem>>, %arg3: memref<3x8x128xf32, #tpu.memory_space<vmem>>, %arg4: memref<3x8x128xf32, #tpu.memory_space<vmem>>, %arg5: memref<3x256x512xbf16, #tpu.memory_space<vmem>>, %arg6: memref<3x1x512xf32, #tpu.memory_space<vmem>>, %arg7: memref<384x128xbf16, #tpu.memory_space<vmem>>, %arg8: memref<1x128xf32, #tpu.memory_space<vmem>>, %arg9: memref<1x8x128xf32, #tpu.memory_space<vmem>>, %arg10: memref<3x8x128xf32, #tpu.memory_space<vmem>>, %arg11: memref<3x8x128xf32, #tpu.memory_space<vmem>>) attributes {dimension_semantics = [#tpu.dimension_semantics<parallel>, #tpu.dimension_semantics<arbitrary>], iteration_bounds = array<i64: 1, 1>, scalar_prefetch = 0 : i64, scratch_operands = 0 : i64, tpu.core_type = #tpu.core_type<tc>, window_params = [{transform_indices = @transform_0, window_bounds = array<i64: 1, 8, 128>}, {transform_indices = @transform_1, window_bounds = array<i64: 3, 8, 128>}, {transform_indices = @transform_2, window_bounds = array<i64: 3, 8, 128>}, {pipeline_mode = #tpu.pipeline_mode<synchronous>, transform_indices = @transform_3, window_bounds = array<i64: 3, 256, 512>}, {pipeline_mode = #tpu.pipeline_mode<synchronous>, transform_indices = @transform_4, window_bounds = array<i64: 3, 1, 512>}, {pipeline_mode = #tpu.pipeline_mode<synchronous>, transform_indices = @transform_5, window_bounds = array<i64: 384, 128>}, {pipeline_mode = #tpu.pipeline_mode<synchronous>, transform_indices = @transform_6, window_bounds = array<i64: 1, 128>}, {transform_indices = @transform_7, window_bounds = array<i64: 1, 8, 128>}, {transform_indices = @transform_8, window_bounds = array<i64: 3, 8, 128>}, {transform_indices = @transform_9, window_bounds = array<i64: 3, 8, 128>}]} {
    %c0_i32 = arith.constant 0 : i32
    %0 = arith.cmpi eq, %arg1, %c0_i32 : i32
    %1 = arith.extui %0 : i1 to i32
    %c0_i32_0 = arith.constant 0 : i32
    %2 = arith.cmpi ne, %1, %c0_i32_0 : i32
    scf.if %2 {
      %c0_19 = arith.constant 0 : index
      %c0_20 = arith.constant 0 : index
      %c0_21 = arith.constant 0 : index
      %27 = vector.load %arg3[%c0_19, %c0_20, %c0_21] : memref<3x8x128xf32, #tpu.memory_space<vmem>>, vector<3x8x128xf32>
      %c0_22 = arith.constant 0 : index
      %c0_23 = arith.constant 0 : index
      %c0_24 = arith.constant 0 : index
      %28 = vector.load %arg10[%c0_22, %c0_23, %c0_24] : memref<3x8x128xf32, #tpu.memory_space<vmem>>, vector<3x8x128xf32>
      tpu.vector_store %arg10[%c0_22, %c0_23, %c0_24], %27 {strides = array<i32>} : memref<3x8x128xf32, #tpu.memory_space<vmem>>, vector<3x8x128xf32>,
      %c0_25 = arith.constant 0 : index
      %c0_26 = arith.constant 0 : index
      %c0_27 = arith.constant 0 : index
      %29 = vector.load %arg4[%c0_25, %c0_26, %c0_27] : memref<3x8x128xf32, #tpu.memory_space<vmem>>, vector<3x8x128xf32>
      %c0_28 = arith.constant 0 : index
      %c0_29 = arith.constant 0 : index
      %c0_30 = arith.constant 0 : index
      %30 = vector.load %arg11[%c0_28, %c0_29, %c0_30] : memref<3x8x128xf32, #tpu.memory_space<vmem>>, vector<3x8x128xf32>
      tpu.vector_store %arg11[%c0_28, %c0_29, %c0_30], %29 {strides = array<i32>} : memref<3x8x128xf32, #tpu.memory_space<vmem>>, vector<3x8x128xf32>,
    } else {
    }
    %c0 = arith.constant 0 : index
    %c0_1 = arith.constant 0 : index
    %c0_2 = arith.constant 0 : index
    %3 = vector.load %arg6[%c0, %c0_1, %c0_2] : memref<3x1x512xf32, #tpu.memory_space<vmem>>, vector<1x1x512xf32>
    %4 = vector.shape_cast %3 : vector<1x1x512xf32> to vector<1x512xf32>
    %5 = vector.shape_cast %4 : vector<1x512xf32> to vector<1x512xf32>
    %6 = vector.broadcast %5 : vector<1x512xf32> to vector<8x512xf32>
    %c1 = arith.constant 1 : index
    %c0_3 = arith.constant 0 : index
    %c0_4 = arith.constant 0 : index
    %7 = vector.load %arg6[%c1, %c0_3, %c0_4] : memref<3x1x512xf32, #tpu.memory_space<vmem>>, vector<1x1x512xf32>
    %8 = vector.shape_cast %7 : vector<1x1x512xf32> to vector<1x512xf32>
    %9 = vector.shape_cast %8 : vector<1x512xf32> to vector<1x512xf32>
    %10 = vector.broadcast %9 : vector<1x512xf32> to vector<8x512xf32>
    %c2 = arith.constant 2 : index
    %c0_5 = arith.constant 0 : index
    %c0_6 = arith.constant 0 : index
    %11 = vector.load %arg6[%c2, %c0_5, %c0_6] : memref<3x1x512xf32, #tpu.memory_space<vmem>>, vector<1x1x512xf32>
    %12 = vector.shape_cast %11 : vector<1x1x512xf32> to vector<1x512xf32>
    %13 = vector.shape_cast %12 : vector<1x512xf32> to vector<1x512xf32>
    %14 = vector.broadcast %13 : vector<1x512xf32> to vector<8x512xf32>
    %c0_7 = arith.constant 0 : index
    %c0_8 = arith.constant 0 : index
    %15 = vector.load %arg8[%c0_7, %c0_8] : memref<1x128xf32, #tpu.memory_space<vmem>>, vector<1x128xf32>
    %16 = vector.shape_cast %15 : vector<1x128xf32> to vector<1x128xf32>
    %17 = vector.broadcast %16 : vector<1x128xf32> to vector<8x128xf32>
    %c1_i32 = arith.constant 1 : i32
    %18 = arith.muli %arg1, %c1_i32 : i32
    %c1_i32_9 = arith.constant 1 : i32
    %19 = arith.subi %c1_i32_9, %18 : i32
    %c1_i32_10 = arith.constant 1 : i32
    %20 = arith.minsi %c1_i32_10, %19 : i32
    %c0_i32_11 = arith.constant 0 : i32
    %21 = arith.subi %20, %c0_i32_11 : i32
    %c1_i32_12 = arith.constant 1 : i32
    %c1_i32_13 = arith.constant 1 : i32
    %22 = arith.subi %c1_i32_12, %c1_i32_13 : i32
    %23 = arith.addi %21, %22 : i32
    %c1_i32_14 = arith.constant 1 : i32
    %24 = arith.divsi %23, %c1_i32_14 : i32
    %c1_i32_15 = arith.constant 1 : i32
    %c0_i32_16 = arith.constant 0 : i32
    %c0_i32_17 = arith.constant 0 : i32
    %25 = arith.subi %24, %c0_i32_17 : i32
    %26 = arith.addi %c0_i32_17, %25 : i32
    %c1_i32_18 = arith.constant 1 : i32
    scf.for %arg12 = %c0_i32_17 to %26 step %c1_i32_18  : i32 {
      %27 = arith.muli %arg12, %c1_i32_15 : i32
      %28 = arith.addi %c0_i32_16, %27 : i32
      %29 = arith.index_cast %28 : i32 to index
      %c0_19 = arith.constant 0 : index
      %c0_20 = arith.constant 0 : index
      %30 = vector.load %arg2[%29, %c0_19, %c0_20] : memref<1x8x128xbf16, #tpu.memory_space<vmem>>, vector<1x8x128xbf16>
      %31 = vector.shape_cast %30 : vector<1x8x128xbf16> to vector<8x128xbf16>
      %c0_21 = arith.constant 0 : index
      %c0_22 = arith.constant 0 : index
      %c0_23 = arith.constant 0 : index
      %32 = vector.load %arg10[%c0_21, %c0_22, %c0_23] : memref<3x8x128xf32, #tpu.memory_space<vmem>>, vector<1x8x128xf32>
      %33 = vector.shape_cast %32 : vector<1x8x128xf32> to vector<8x128xf32>
      %c0_24 = arith.constant 0 : index
      %c0_25 = arith.constant 0 : index
      %c0_26 = arith.constant 0 : index
      %34 = vector.load %arg11[%c0_24, %c0_25, %c0_26] : memref<3x8x128xf32, #tpu.memory_space<vmem>>, vector<1x8x128xf32>
      %35 = vector.shape_cast %34 : vector<1x8x128xf32> to vector<8x128xf32>
      %36 = arith.truncf %33 : vector<8x128xf32> to vector<8x128xbf16>
      %37 = tpu.concatenate %31, %36 in 1 : vector<8x128xbf16>, vector<8x128xbf16> -> vector<8x256xbf16>
      %c0_27 = arith.constant 0 : index
      %c0_28 = arith.constant 0 : index
      %c0_29 = arith.constant 0 : index
      %38 = vector.load %arg5[%c0_27, %c0_28, %c0_29] : memref<3x256x512xbf16, #tpu.memory_space<vmem>>, vector<1x256x512xbf16>
      %39 = vector.shape_cast %38 : vector<1x256x512xbf16> to vector<256x512xbf16>
      %cst = arith.constant dense<0.000000e+00> : vector<8x512xf32>
      %40 = tpu.matmul %37, %39, %cst {dimension_numbers = #tpu.dot_dimension_numbers<[1], [0], [0], [1], [0, 0, 1, 1], [], []>} : vector<8x256xbf16>, vector<256x512xbf16>, vector<8x512xf32> -> vector<8x512xf32>
      %41 = arith.addf %40, %6 : vector<8x512xf32>
      %42 = vector.extract_strided_slice %41 {offsets = [0, 0], sizes = [8, 128], strides = [1, 1]} : vector<8x512xf32> to vector<8x128xf32>
      %43 = arith.negf %42 : vector<8x128xf32>
      %44 = math.exp %43 : vector<8x128xf32>
      %cst_30 = arith.constant 1.000000e+00 : f32
      %45 = vector.broadcast %cst_30 : f32 to vector<8x128xf32>
      %46 = arith.addf %45, %44 : vector<8x128xf32>
      %47 = arith.divf %45, %46 : vector<8x128xf32>
      %48 = vector.extract_strided_slice %41 {offsets = [0, 128], sizes = [8, 128], strides = [1, 1]} : vector<8x512xf32> to vector<8x128xf32>
      %49 = arith.negf %48 : vector<8x128xf32>
      %50 = math.exp %49 : vector<8x128xf32>
      %cst_31 = arith.constant 1.000000e+00 : f32
      %51 = vector.broadcast %cst_31 : f32 to vector<8x128xf32>
      %52 = arith.addf %51, %50 : vector<8x128xf32>
      %53 = arith.divf %51, %52 : vector<8x128xf32>
      %54 = vector.extract_strided_slice %41 {offsets = [0, 256], sizes = [8, 128], strides = [1, 1]} : vector<8x512xf32> to vector<8x128xf32>
      %55 = math.tanh %54 : vector<8x128xf32>
      %56 = vector.extract_strided_slice %41 {offsets = [0, 384], sizes = [8, 128], strides = [1, 1]} : vector<8x512xf32> to vector<8x128xf32>
      %57 = arith.negf %56 : vector<8x128xf32>
      %58 = math.exp %57 : vector<8x128xf32>
      %cst_32 = arith.constant 1.000000e+00 : f32
      %59 = vector.broadcast %cst_32 : f32 to vector<8x128xf32>
      %60 = arith.addf %59, %58 : vector<8x128xf32>
      %61 = arith.divf %59, %60 : vector<8x128xf32>
      %62 = arith.mulf %53, %35 : vector<8x128xf32>
      %63 = arith.mulf %47, %55 : vector<8x128xf32>
      %64 = arith.addf %62, %63 : vector<8x128xf32>
      %65 = math.tanh %64 : vector<8x128xf32>
      %66 = arith.mulf %61, %65 : vector<8x128xf32>
      %c0_33 = arith.constant 0 : index
      %c0_34 = arith.constant 0 : index
      %c0_35 = arith.constant 0 : index
      %67 = vector.load %arg10[%c0_33, %c0_34, %c0_35] : memref<3x8x128xf32, #tpu.memory_space<vmem>>, vector<1x8x128xf32>
      %68 = vector.shape_cast %67 : vector<1x8x128xf32> to vector<8x128xf32>
      %69 = vector.shape_cast %66 : vector<8x128xf32> to vector<1x8x128xf32>
      tpu.vector_store %arg10[%c0_33, %c0_34, %c0_35], %69 {strides = array<i32>} : memref<3x8x128xf32, #tpu.memory_space<vmem>>, vector<1x8x128xf32>,
      %c0_36 = arith.constant 0 : index
      %c0_37 = arith.constant 0 : index
      %c0_38 = arith.constant 0 : index
      %70 = vector.load %arg11[%c0_36, %c0_37, %c0_38] : memref<3x8x128xf32, #tpu.memory_space<vmem>>, vector<1x8x128xf32>
      %71 = vector.shape_cast %70 : vector<1x8x128xf32> to vector<8x128xf32>
      %72 = vector.shape_cast %64 : vector<8x128xf32> to vector<1x8x128xf32>
      tpu.vector_store %arg11[%c0_36, %c0_37, %c0_38], %72 {strides = array<i32>} : memref<3x8x128xf32, #tpu.memory_space<vmem>>, vector<1x8x128xf32>,
      %73 = arith.truncf %66 : vector<8x128xf32> to vector<8x128xbf16>
      %c1_39 = arith.constant 1 : index
      %c0_40 = arith.constant 0 : index
      %c0_41 = arith.constant 0 : index
      %74 = vector.load %arg10[%c1_39, %c0_40, %c0_41] : memref<3x8x128xf32, #tpu.memory_space<vmem>>, vector<1x8x128xf32>
      %75 = vector.shape_cast %74 : vector<1x8x128xf32> to vector<8x128xf32>
      %c1_42 = arith.constant 1 : index
      %c0_43 = arith.constant 0 : index
      %c0_44 = arith.constant 0 : index
      %76 = vector.load %arg11[%c1_42, %c0_43, %c0_44] : memref<3x8x128xf32, #tpu.memory_space<vmem>>, vector<1x8x128xf32>
      %77 = vector.shape_cast %76 : vector<1x8x128xf32> to vector<8x128xf32>
      %78 = arith.truncf %75 : vector<8x128xf32> to vector<8x128xbf16>
      %79 = tpu.concatenate %73, %78 in 1 : vector<8x128xbf16>, vector<8x128xbf16> -> vector<8x256xbf16>
      %c1_45 = arith.constant 1 : index
      %c0_46 = arith.constant 0 : index
      %c0_47 = arith.constant 0 : index
      %80 = vector.load %arg5[%c1_45, %c0_46, %c0_47] : memref<3x256x512xbf16, #tpu.memory_space<vmem>>, vector<1x256x512xbf16>
      %81 = vector.shape_cast %80 : vector<1x256x512xbf16> to vector<256x512xbf16>
      %cst_48 = arith.constant dense<0.000000e+00> : vector<8x512xf32>
      %82 = tpu.matmul %79, %81, %cst_48 {dimension_numbers = #tpu.dot_dimension_numbers<[1], [0], [0], [1], [0, 0, 1, 1], [], []>} : vector<8x256xbf16>, vector<256x512xbf16>, vector<8x512xf32> -> vector<8x512xf32>
      %83 = arith.addf %82, %10 : vector<8x512xf32>
      %84 = vector.extract_strided_slice %83 {offsets = [0, 0], sizes = [8, 128], strides = [1, 1]} : vector<8x512xf32> to vector<8x128xf32>
      %85 = arith.negf %84 : vector<8x128xf32>
      %86 = math.exp %85 : vector<8x128xf32>
      %cst_49 = arith.constant 1.000000e+00 : f32
      %87 = vector.broadcast %cst_49 : f32 to vector<8x128xf32>
      %88 = arith.addf %87, %86 : vector<8x128xf32>
      %89 = arith.divf %87, %88 : vector<8x128xf32>
      %90 = vector.extract_strided_slice %83 {offsets = [0, 128], sizes = [8, 128], strides = [1, 1]} : vector<8x512xf32> to vector<8x128xf32>
      %91 = arith.negf %90 : vector<8x128xf32>
      %92 = math.exp %91 : vector<8x128xf32>
      %cst_50 = arith.constant 1.000000e+00 : f32
      %93 = vector.broadcast %cst_50 : f32 to vector<8x128xf32>
      %94 = arith.addf %93, %92 : vector<8x128xf32>
      %95 = arith.divf %93, %94 : vector<8x128xf32>
      %96 = vector.extract_strided_slice %83 {offsets = [0, 256], sizes = [8, 128], strides = [1, 1]} : vector<8x512xf32> to vector<8x128xf32>
      %97 = math.tanh %96 : vector<8x128xf32>
      %98 = vector.extract_strided_slice %83 {offsets = [0, 384], sizes = [8, 128], strides = [1, 1]} : vector<8x512xf32> to vector<8x128xf32>
      %99 = arith.negf %98 : vector<8x128xf32>
      %100 = math.exp %99 : vector<8x128xf32>
      %cst_51 = arith.constant 1.000000e+00 : f32
      %101 = vector.broadcast %cst_51 : f32 to vector<8x128xf32>
      %102 = arith.addf %101, %100 : vector<8x128xf32>
      %103 = arith.divf %101, %102 : vector<8x128xf32>
      %104 = arith.mulf %95, %77 : vector<8x128xf32>
      %105 = arith.mulf %89, %97 : vector<8x128xf32>
      %106 = arith.addf %104, %105 : vector<8x128xf32>
      %107 = math.tanh %106 : vector<8x128xf32>
      %108 = arith.mulf %103, %107 : vector<8x128xf32>
      %c1_52 = arith.constant 1 : index
      %c0_53 = arith.constant 0 : index
      %c0_54 = arith.constant 0 : index
      %109 = vector.load %arg10[%c1_52, %c0_53, %c0_54] : memref<3x8x128xf32, #tpu.memory_space<vmem>>, vector<1x8x128xf32>
      %110 = vector.shape_cast %109 : vector<1x8x128xf32> to vector<8x128xf32>
      %111 = vector.shape_cast %108 : vector<8x128xf32> to vector<1x8x128xf32>
      tpu.vector_store %arg10[%c1_52, %c0_53, %c0_54], %111 {strides = array<i32>} : memref<3x8x128xf32, #tpu.memory_space<vmem>>, vector<1x8x128xf32>,
      %c1_55 = arith.constant 1 : index
      %c0_56 = arith.constant 0 : index
      %c0_57 = arith.constant 0 : index
      %112 = vector.load %arg11[%c1_55, %c0_56, %c0_57] : memref<3x8x128xf32, #tpu.memory_space<vmem>>, vector<1x8x128xf32>
      %113 = vector.shape_cast %112 : vector<1x8x128xf32> to vector<8x128xf32>
      %114 = vector.shape_cast %106 : vector<8x128xf32> to vector<1x8x128xf32>
      tpu.vector_store %arg11[%c1_55, %c0_56, %c0_57], %114 {strides = array<i32>} : memref<3x8x128xf32, #tpu.memory_space<vmem>>, vector<1x8x128xf32>,
      %115 = arith.truncf %108 : vector<8x128xf32> to vector<8x128xbf16>
      %c2_58 = arith.constant 2 : index
      %c0_59 = arith.constant 0 : index
      %c0_60 = arith.constant 0 : index
      %116 = vector.load %arg10[%c2_58, %c0_59, %c0_60] : memref<3x8x128xf32, #tpu.memory_space<vmem>>, vector<1x8x128xf32>
      %117 = vector.shape_cast %116 : vector<1x8x128xf32> to vector<8x128xf32>
      %c2_61 = arith.constant 2 : index
      %c0_62 = arith.constant 0 : index
      %c0_63 = arith.constant 0 : index
      %118 = vector.load %arg11[%c2_61, %c0_62, %c0_63] : memref<3x8x128xf32, #tpu.memory_space<vmem>>, vector<1x8x128xf32>
      %119 = vector.shape_cast %118 : vector<1x8x128xf32> to vector<8x128xf32>
      %120 = arith.truncf %117 : vector<8x128xf32> to vector<8x128xbf16>
      %121 = tpu.concatenate %115, %120 in 1 : vector<8x128xbf16>, vector<8x128xbf16> -> vector<8x256xbf16>
      %c2_64 = arith.constant 2 : index
      %c0_65 = arith.constant 0 : index
      %c0_66 = arith.constant 0 : index
      %122 = vector.load %arg5[%c2_64, %c0_65, %c0_66] : memref<3x256x512xbf16, #tpu.memory_space<vmem>>, vector<1x256x512xbf16>
      %123 = vector.shape_cast %122 : vector<1x256x512xbf16> to vector<256x512xbf16>
      %cst_67 = arith.constant dense<0.000000e+00> : vector<8x512xf32>
      %124 = tpu.matmul %121, %123, %cst_67 {dimension_numbers = #tpu.dot_dimension_numbers<[1], [0], [0], [1], [0, 0, 1, 1], [], []>} : vector<8x256xbf16>, vector<256x512xbf16>, vector<8x512xf32> -> vector<8x512xf32>
      %125 = arith.addf %124, %14 : vector<8x512xf32>
      %126 = vector.extract_strided_slice %125 {offsets = [0, 0], sizes = [8, 128], strides = [1, 1]} : vector<8x512xf32> to vector<8x128xf32>
      %127 = arith.negf %126 : vector<8x128xf32>
      %128 = math.exp %127 : vector<8x128xf32>
      %cst_68 = arith.constant 1.000000e+00 : f32
      %129 = vector.broadcast %cst_68 : f32 to vector<8x128xf32>
      %130 = arith.addf %129, %128 : vector<8x128xf32>
      %131 = arith.divf %129, %130 : vector<8x128xf32>
      %132 = vector.extract_strided_slice %125 {offsets = [0, 128], sizes = [8, 128], strides = [1, 1]} : vector<8x512xf32> to vector<8x128xf32>
      %133 = arith.negf %132 : vector<8x128xf32>
      %134 = math.exp %133 : vector<8x128xf32>
      %cst_69 = arith.constant 1.000000e+00 : f32
      %135 = vector.broadcast %cst_69 : f32 to vector<8x128xf32>
      %136 = arith.addf %135, %134 : vector<8x128xf32>
      %137 = arith.divf %135, %136 : vector<8x128xf32>
      %138 = vector.extract_strided_slice %125 {offsets = [0, 256], sizes = [8, 128], strides = [1, 1]} : vector<8x512xf32> to vector<8x128xf32>
      %139 = math.tanh %138 : vector<8x128xf32>
      %140 = vector.extract_strided_slice %125 {offsets = [0, 384], sizes = [8, 128], strides = [1, 1]} : vector<8x512xf32> to vector<8x128xf32>
      %141 = arith.negf %140 : vector<8x128xf32>
      %142 = math.exp %141 : vector<8x128xf32>
      %cst_70 = arith.constant 1.000000e+00 : f32
      %143 = vector.broadcast %cst_70 : f32 to vector<8x128xf32>
      %144 = arith.addf %143, %142 : vector<8x128xf32>
      %145 = arith.divf %143, %144 : vector<8x128xf32>
      %146 = arith.mulf %137, %119 : vector<8x128xf32>
      %147 = arith.mulf %131, %139 : vector<8x128xf32>
      %148 = arith.addf %146, %147 : vector<8x128xf32>
      %149 = math.tanh %148 : vector<8x128xf32>
      %150 = arith.mulf %145, %149 : vector<8x128xf32>
      %c2_71 = arith.constant 2 : index
      %c0_72 = arith.constant 0 : index
      %c0_73 = arith.constant 0 : index
      %151 = vector.load %arg10[%c2_71, %c0_72, %c0_73] : memref<3x8x128xf32, #tpu.memory_space<vmem>>, vector<1x8x128xf32>
      %152 = vector.shape_cast %151 : vector<1x8x128xf32> to vector<8x128xf32>
      %153 = vector.shape_cast %150 : vector<8x128xf32> to vector<1x8x128xf32>
      tpu.vector_store %arg10[%c2_71, %c0_72, %c0_73], %153 {strides = array<i32>} : memref<3x8x128xf32, #tpu.memory_space<vmem>>, vector<1x8x128xf32>,
      %c2_74 = arith.constant 2 : index
      %c0_75 = arith.constant 0 : index
      %c0_76 = arith.constant 0 : index
      %154 = vector.load %arg11[%c2_74, %c0_75, %c0_76] : memref<3x8x128xf32, #tpu.memory_space<vmem>>, vector<1x8x128xf32>
      %155 = vector.shape_cast %154 : vector<1x8x128xf32> to vector<8x128xf32>
      %156 = vector.shape_cast %148 : vector<8x128xf32> to vector<1x8x128xf32>
      tpu.vector_store %arg11[%c2_74, %c0_75, %c0_76], %156 {strides = array<i32>} : memref<3x8x128xf32, #tpu.memory_space<vmem>>, vector<1x8x128xf32>,
      %157 = arith.truncf %150 : vector<8x128xf32> to vector<8x128xbf16>
      %158 = tpu.concatenate %73, %115, %157 in 1 : vector<8x128xbf16>, vector<8x128xbf16>, vector<8x128xbf16> -> vector<8x384xbf16>
      %c0_77 = arith.constant 0 : index
      %c0_78 = arith.constant 0 : index
      %159 = vector.load %arg7[%c0_77, %c0_78] : memref<384x128xbf16, #tpu.memory_space<vmem>>, vector<384x128xbf16>
      %cst_79 = arith.constant dense<0.000000e+00> : vector<8x128xf32>
      %160 = tpu.matmul %158, %159, %cst_79 {dimension_numbers = #tpu.dot_dimension_numbers<[1], [0], [0], [1], [0, 0, 1, 1], [], []>} : vector<8x384xbf16>, vector<384x128xbf16>, vector<8x128xf32> -> vector<8x128xf32>
      %161 = arith.addf %160, %17 : vector<8x128xf32>
      %162 = arith.index_cast %28 : i32 to index
      %c0_80 = arith.constant 0 : index
      %c0_81 = arith.constant 0 : index
      %163 = vector.load %arg9[%162, %c0_80, %c0_81] : memref<1x8x128xf32, #tpu.memory_space<vmem>>, vector<1x8x128xf32>
      %164 = vector.shape_cast %163 : vector<1x8x128xf32> to vector<8x128xf32>
      %165 = vector.shape_cast %161 : vector<8x128xf32> to vector<1x8x128xf32>
      tpu.vector_store %arg9[%162, %c0_80, %c0_81], %165 {strides = array<i32>} : memref<1x8x128xf32, #tpu.memory_space<vmem>>, vector<1x8x128xf32>,
    }
    return
  }
  func.func @transform_0(%arg0: i32, %arg1: i32) -> (i32, i32, i32) {
    %c0_i32 = arith.constant 0 : i32
    %c0_i32_0 = arith.constant 0 : i32
    return %arg1, %arg0, %c0_i32 : i32, i32, i32
  }
  func.func @transform_1(%arg0: i32, %arg1: i32) -> (i32, i32, i32) {
    %c0_i32 = arith.constant 0 : i32
    %c0_i32_0 = arith.constant 0 : i32
    %c0_i32_1 = arith.constant 0 : i32
    return %c0_i32, %arg0, %c0_i32_0 : i32, i32, i32
  }
  func.func @transform_2(%arg0: i32, %arg1: i32) -> (i32, i32, i32) {
    %c0_i32 = arith.constant 0 : i32
    %c0_i32_0 = arith.constant 0 : i32
    %c0_i32_1 = arith.constant 0 : i32
    return %c0_i32, %arg0, %c0_i32_0 : i32, i32, i32
  }
  func.func @transform_3(%arg0: i32, %arg1: i32) -> (i32, i32, i32) {
    %c0_i32 = arith.constant 0 : i32
    %c0_i32_0 = arith.constant 0 : i32
    %c0_i32_1 = arith.constant 0 : i32
    %c0_i32_2 = arith.constant 0 : i32
    return %c0_i32, %c0_i32_0, %c0_i32_1 : i32, i32, i32
  }
  func.func @transform_4(%arg0: i32, %arg1: i32) -> (i32, i32, i32) {
    %c0_i32 = arith.constant 0 : i32
    %c0_i32_0 = arith.constant 0 : i32
    %c0_i32_1 = arith.constant 0 : i32
    %c0_i32_2 = arith.constant 0 : i32
    return %c0_i32, %c0_i32_0, %c0_i32_1 : i32, i32, i32
  }
  func.func @transform_5(%arg0: i32, %arg1: i32) -> (i32, i32) {
    %c0_i32 = arith.constant 0 : i32
    %c0_i32_0 = arith.constant 0 : i32
    %c0_i32_1 = arith.constant 0 : i32
    return %c0_i32, %c0_i32_0 : i32, i32
  }
  func.func @transform_6(%arg0: i32, %arg1: i32) -> (i32, i32) {
    %c0_i32 = arith.constant 0 : i32
    %c0_i32_0 = arith.constant 0 : i32
    %c0_i32_1 = arith.constant 0 : i32
    return %c0_i32, %c0_i32_0 : i32, i32
  }
  func.func @transform_7(%arg0: i32, %arg1: i32) -> (i32, i32, i32) {
    %c0_i32 = arith.constant 0 : i32
    %c0_i32_0 = arith.constant 0 : i32
    return %arg1, %arg0, %c0_i32 : i32, i32, i32
  }
  func.func @transform_8(%arg0: i32, %arg1: i32) -> (i32, i32, i32) {
    %c0_i32 = arith.constant 0 : i32
    %c0_i32_0 = arith.constant 0 : i32
    %c0_i32_1 = arith.constant 0 : i32
    return %c0_i32, %arg0, %c0_i32_0 : i32, i32, i32
  }
  func.func @transform_9(%arg0: i32, %arg1: i32) -> (i32, i32, i32) {
    %c0_i32 = arith.constant 0 : i32
    %c0_i32_0 = arith.constant 0 : i32
    %c0_i32_1 = arith.constant 0 : i32
    return %c0_i32, %arg0, %c0_i32_0 : i32, i32, i32
  }
}

</mosaic_0001>

<llo_original>
// kernel: deepar_steps.1
$region0: #{deepar_steps.1}
  #allocation0 [shape = 'u32[]', space=smem, size = 0x4, offset = 0x4, fixed_abs, tag = 'smem constant byte address 0x4 - core index']
  #allocation1 [shape = 'u32[144,128]{1,0:T(1,128)}', space=vmem, size = 0x12000, scoped, tag = 'internal scratch']
  %s0 = inlined_call_operand.vmem [shape: bf16[1,8,128], index: 0, kind: input, shape index: {}]
  %s1 = inlined_call_operand.vmem [shape: f32[3,8,128], index: 1, kind: input, shape index: {}]
  %s2 = inlined_call_operand.vmem [shape: f32[3,8,128], index: 2, kind: input, shape index: {}]
  %s3 = inlined_call_operand.hbm [shape: bf16[3,256,512], index: 3, kind: input, shape index: {}]
  %s4 = inlined_call_operand.vmem [shape: f32[3,1,512], index: 4, kind: input, shape index: {}]
  %s5 = inlined_call_operand.hbm [shape: bf16[384,128], index: 5, kind: input, shape index: {}]
  %s6 = inlined_call_operand.vmem [shape: f32[1,128], index: 6, kind: input, shape index: {}]
  %s7 = inlined_call_operand.vmem [shape: f32[1,8,128], index: 7, kind: output, shape index: {0}]
  %s8 = inlined_call_operand.vmem [shape: f32[3,8,128], index: 8, kind: output, shape index: {1}]
  %s9 = inlined_call_operand.vmem [shape: f32[3,8,128], index: 9, kind: output, shape index: {2}]
  %10 = xla_tuple %s7, %s8, %s9
  %s11 = sld [smem:[#allocation0]]
  $region73: #{deepar_steps.1} parent=0
    _
  %s13 = ssub.s32 1, %s11
  %s14 = scalar_select 0, %s13, %s11
  $region1: #{deepar_steps.1} parent=0
    #allocation2 [shape = 'u8[786432]{0}', space=vmem, size = 0xc0000, scoped, tag = 'input window, operand 3, single buffered']
    #allocation3 [shape = 's32[1]{0}', space=sflag, size = 0x4, scoped, tag = 'scoped memory for deepar_steps.1']
    #allocation4 [shape = 'u8[98304]{0}', space=vmem, size = 0x18000, scoped, tag = 'input window, operand 5, single buffered']
    #allocation5 [shape = 's32[1]{0}', space=sflag, size = 0x4, scoped, tag = 'scoped memory for deepar_steps.1']
    %15 = vsyncpa [#allocation3], 0
    %16 = vsyncpa [#allocation5], 0
    // Predicated region
    $region2: #{deepar_steps.1} parent=1 // pred_check
      _
    $region3: #{deepar_steps.1} parent=1 // pred_check_branch
      %18 = sbr.rel (0) target = $region5
    $region4: #{deepar_steps.1} parent=1 // pred_region
      _
    $region5: #{deepar_steps.1} parent=1 // pred_fallthru
      _
    // Predicated region
    $region6: #{deepar_steps.1} parent=1 // pred_check
      _
    $region7: #{deepar_steps.1} parent=1 // pred_check_branch
      %20 = sbr.rel (0) target = $region9
    $region8: #{deepar_steps.1} parent=1 // pred_region
      _
    $region9: #{deepar_steps.1} parent=1 // pred_fallthru
      _
    // Predicated region
    $region10: #{deepar_steps.1} parent=1 // pred_check
      _
    $region11: #{deepar_steps.1} parent=1 // pred_check_branch
      %22 = sbr.rel (0) target = $region13
    $region12: #{deepar_steps.1} parent=1 // pred_region
      _
    $region13: #{deepar_steps.1} parent=1 // pred_fallthru
      _
    // Predicated region
    $region14: #{deepar_steps.1} parent=1 // pred_check
      _
    $region15: #{deepar_steps.1} parent=1 // pred_check_branch
      %24 = sbr.rel (0) target = $region17
    $region16: #{deepar_steps.1} parent=1 // pred_region
      %s26 = ssub.s32 24576, 24576
      %27 = vsyncadd [#allocation3], %s26
      %s28 = sshll.u32 [#allocation2], 4
      %s29 = int_to_ptr.vmem [resolvable:$true] %s28
      %34 = dma.hbm_to_vmem [thread:$0]  %s3, 24576, %s29, [#allocation3], 256, 256, 16
    $region17: #{deepar_steps.1} parent=1 // pred_fallthru
      _
    // Predicated region
    $region18: #{deepar_steps.1} parent=1 // pred_check
      _
    $region19: #{deepar_steps.1} parent=1 // pred_check_branch
      %36 = sbr.rel (0) target = $region21
    $region20: #{deepar_steps.1} parent=1 // pred_region
      _
    $region21: #{deepar_steps.1} parent=1 // pred_fallthru
      _
    // Predicated region
    $region22: #{deepar_steps.1} parent=1 // pred_check
      _
    $region23: #{deepar_steps.1} parent=1 // pred_check_branch
      %38 = sbr.rel (0) target = $region25
    $region24: #{deepar_steps.1} parent=1 // pred_region
      %s40 = ssub.s32 3072, 3072
      %41 = vsyncadd [#allocation5], %s40
      %s42 = sshll.u32 [#allocation4], 4
      %s43 = int_to_ptr.vmem [resolvable:$true] %s42
      %48 = dma.hbm_to_vmem [thread:$0]  %s5, 3072, %s43, [#allocation5], 64, 64, 4
    $region25: #{deepar_steps.1} parent=1 // pred_fallthru
      _
    // Predicated region
    $region26: #{deepar_steps.1} parent=1 // pred_check
      _
    $region27: #{deepar_steps.1} parent=1 // pred_check_branch
      %50 = sbr.rel (0) target = $region29
    $region28: #{deepar_steps.1} parent=1 // pred_region
      _
    $region29: #{deepar_steps.1} parent=1 // pred_fallthru
      _
    // Predicated region
    $region30: #{deepar_steps.1} parent=1 // pred_check
      _
    $region31: #{deepar_steps.1} parent=1 // pred_check_branch
      %52 = sbr.rel (0) target = $region33
    $region32: #{deepar_steps.1} parent=1 // pred_region
      %53 = dma.done [#allocation3], 24576
    $region33: #{deepar_steps.1} parent=1 // pred_fallthru
      _
    // Predicated region
    $region34: #{deepar_steps.1} parent=1 // pred_check
      _
    $region35: #{deepar_steps.1} parent=1 // pred_check_branch
      %55 = sbr.rel (0) target = $region37
    $region36: #{deepar_steps.1} parent=1 // pred_region
      %56 = dma.done [#allocation5], 3072
    $region37: #{deepar_steps.1} parent=1 // pred_fallthru
      _
    %p58 = scmp.eq.s32.totalorder 0, 0
    // Predicated region
    $region38: #{deepar_steps.1} parent=1 // pred_check
      %p59 = pneg %p58
    $region39: #{deepar_steps.1} parent=1 // pred_check_branch
      %61 = sbr.rel (%p59) target = $region41
    $region40: #{deepar_steps.1} parent=1 // pred_region
      %v62 = vld [vmem:[%s1] sm:$0xff]
      %v63 = vld [vmem:[%s1 + $0x8] sm:$0xff]
      %v64 = vld [vmem:[%s1 + $0x10] sm:$0xff]
      %65 = vst [vmem:[%s8] sm:$0xff] %v62
      %66 = vst [vmem:[%s8 + $0x8] sm:$0xff] %v63
      %67 = vst [vmem:[%s8 + $0x10] sm:$0xff] %v64
      %v68 = vld [vmem:[%s2] sm:$0xff]
      %v69 = vld [vmem:[%s2 + $0x8] sm:$0xff]
      %v70 = vld [vmem:[%s2 + $0x10] sm:$0xff]
      %71 = vst [vmem:[%s9] sm:$0xff] %v68
      %72 = vst [vmem:[%s9 + $0x8] sm:$0xff] %v69
      %73 = vst [vmem:[%s9 + $0x10] sm:$0xff] %v70
    $region41: #{deepar_steps.1} parent=1 // pred_fallthru
      _
    %v74 = vld [vmem:[%s4] sm:$0xf]
    %v76 = vlaneseq
    %v77 = vshrl.u32 %v76, 7
    %v78 = vsub.s32 0, %v77
    %v79 = vrot.slane %v74, %v78
    %v80 = vlaneseq
    %v81 = vshrl.u32 %v80, 7
    %v82 = vsub.s32 1, %v81
    %v83 = vrot.slane %v74, %v82
    %v84 = vlaneseq
    %v85 = vshrl.u32 %v84, 7
    %v86 = vsub.s32 2, %v85
    %v87 = vrot.slane %v74, %v86
    %v88 = vlaneseq
    %v89 = vshrl.u32 %v88, 7
    %v90 = vsub.s32 3, %v89
    %v91 = vrot.slane %v74, %v90
    %s96 = scalar_lea.vmem %s4, 4
    %v97 = vld [vmem:[%s96] sm:$0xf]
    %v99 = vlaneseq
    %v100 = vshrl.u32 %v99, 7
    %v101 = vsub.s32 0, %v100
    %v102 = vrot.slane %v97, %v101
    %v103 = vlaneseq
    %v104 = vshrl.u32 %v103, 7
    %v105 = vsub.s32 1, %v104
    %v106 = vrot.slane %v97, %v105
    %v107 = vlaneseq
    %v108 = vshrl.u32 %v107, 7
    %v109 = vsub.s32 2, %v108
    %v110 = vrot.slane %v97, %v109
    %v111 = vlaneseq
    %v112 = vshrl.u32 %v111, 7
    %v113 = vsub.s32 3, %v112
    %v114 = vrot.slane %v97, %v113
    %s119 = scalar_lea.vmem %s4, 8
    %v120 = vld [vmem:[%s119] sm:$0xf]
    %v122 = vlaneseq
    %v123 = vshrl.u32 %v122, 7
    %v124 = vsub.s32 0, %v123
    %v125 = vrot.slane %v120, %v124
    %v126 = vlaneseq
    %v127 = vshrl.u32 %v126, 7
    %v128 = vsub.s32 1, %v127
    %v129 = vrot.slane %v120, %v128
    %v130 = vlaneseq
    %v131 = vshrl.u32 %v130, 7
    %v132 = vsub.s32 2, %v131
    %v133 = vrot.slane %v120, %v132
    %v134 = vlaneseq
    %v135 = vshrl.u32 %v134, 7
    %v136 = vsub.s32 3, %v135
    %v137 = vrot.slane %v120, %v136
    %v142 = vld [vmem:[%s6] sm:$0x1]
    %v144 = vlaneseq
    %v145 = vshrl.u32 %v144, 7
    %v146 = vsub.s32 0, %v145
    %v147 = vrot.slane %v142, %v146
    %s149 = ssub.s32 1, 0
    %p150 = scmp.lt.s32.totalorder %s149, 1
    %s151 = scalar_select %p150, %s149, 1
    // While loop
    $region42: #{deepar_steps.1} parent=1 // loop_pre_header
      _
    $region43: #{deepar_steps.1} parent=1 // loop_header
      %s153 = sphi 0, %s155
      %p154 = scmp.ge.s32.totalorder %s153, %s151
    $region44: #{deepar_steps.1} parent=1 // loop_header_branch
      %157 = sbr.rel (%p154) target = $region48
    $region45: #{deepar_steps.1} parent=1 // loop_body
      %s158 = smul.addr %s153, 4
      %s159 = scalar_lea.vmem %s0, %s158
      %v160 = vld [vmem:[%s159] sm:$0xf]
      %v161 = vld [vmem:[%s8] sm:$0xff]
      %v162 = vld [vmem:[%s9] sm:$0xff]
      %v163 = vpack.c.bf16 %v161, %v161
      %v164 = vld [vmem:[#allocation2] sm:$0xff]
      %v165 = vld [vmem:[#allocation2 + $0x8] sm:$0xff]
      %v166 = vld [vmem:[#allocation2 + $0x10] sm:$0xff]
      %v167 = vld [vmem:[#allocation2 + $0x18] sm:$0xff]
      %v168 = vld [vmem:[#allocation2 + $0x20] sm:$0xff]
      %v169 = vld [vmem:[#allocation2 + $0x28] sm:$0xff]
      %v170 = vld [vmem:[#allocation2 + $0x30] sm:$0xff]
      %v171 = vld [vmem:[#allocation2 + $0x38] sm:$0xff]
      %v172 = vld [vmem:[#allocation2 + $0x40] sm:$0xff]
      %v173 = vld [vmem:[#allocation2 + $0x48] sm:$0xff]
      %v174 = vld [vmem:[#allocation2 + $0x50] sm:$0xff]
      %v175 = vld [vmem:[#allocation2 + $0x58] sm:$0xff]
      %v176 = vld [vmem:[#allocation2 + $0x60] sm:$0xff]
      %v177 = vld [vmem:[#allocation2 + $0x68] sm:$0xff]
      %v178 = vld [vmem:[#allocation2 + $0x70] sm:$0xff]
      %v179 = vld [vmem:[#allocation2 + $0x78] sm:$0xff]
      %v180 = vld [vmem:[#allocation2 + $0x80] sm:$0xff]
      %v181 = vld [vmem:[#allocation2 + $0x88] sm:$0xff]
      %v182 = vld [vmem:[#allocation2 + $0x90] sm:$0xff]
      %v183 = vld [vmem:[#allocation2 + $0x98] sm:$0xff]
      %v184 = vld [vmem:[#allocation2 + $0xa0] sm:$0xff]
      %v185 = vld [vmem:[#allocation2 + $0xa8] sm:$0xff]
      %v186 = vld [vmem:[#allocation2 + $0xb0] sm:$0xff]
      %v187 = vld [vmem:[#allocation2 + $0xb8] sm:$0xff]
      %v188 = vld [vmem:[#allocation2 + $0xc0] sm:$0xff]
      %v189 = vld [vmem:[#allocation2 + $0xc8] sm:$0xff]
      %v190 = vld [vmem:[#allocation2 + $0xd0] sm:$0xff]
      %v191 = vld [vmem:[#allocation2 + $0xd8] sm:$0xff]
      %v192 = vld [vmem:[#allocation2 + $0xe0] sm:$0xff]
      %v193 = vld [vmem:[#allocation2 + $0xe8] sm:$0xff]
      %v194 = vld [vmem:[#allocation2 + $0xf0] sm:$0xff]
      %v195 = vld [vmem:[#allocation2 + $0xf8] sm:$0xff]
      %v196 = vld [vmem:[#allocation2 + $0x100] sm:$0xff]
      %v197 = vld [vmem:[#allocation2 + $0x108] sm:$0xff]
      %v198 = vld [vmem:[#allocation2 + $0x110] sm:$0xff]
      %v199 = vld [vmem:[#allocation2 + $0x118] sm:$0xff]
      %v200 = vld [vmem:[#allocation2 + $0x120] sm:$0xff]
      %v201 = vld [vmem:[#allocation2 + $0x128] sm:$0xff]
      %v202 = vld [vmem:[#allocation2 + $0x130] sm:$0xff]
      %v203 = vld [vmem:[#allocation2 + $0x138] sm:$0xff]
      %v204 = vld [vmem:[#allocation2 + $0x140] sm:$0xff]
      %v205 = vld [vmem:[#allocation2 + $0x148] sm:$0xff]
      %v206 = vld [vmem:[#allocation2 + $0x150] sm:$0xff]
      %v207 = vld [vmem:[#allocation2 + $0x158] sm:$0xff]
      %v208 = vld [vmem:[#allocation2 + $0x160] sm:$0xff]
      %v209 = vld [vmem:[#allocation2 + $0x168] sm:$0xff]
      %v210 = vld [vmem:[#allocation2 + $0x170] sm:$0xff]
      %v211 = vld [vmem:[#allocation2 + $0x178] sm:$0xff]
      %v212 = vld [vmem:[#allocation2 + $0x180] sm:$0xff]
      %v213 = vld [vmem:[#allocation2 + $0x188] sm:$0xff]
      %v214 = vld [vmem:[#allocation2 + $0x190] sm:$0xff]
      %v215 = vld [vmem:[#allocation2 + $0x198] sm:$0xff]
      %v216 = vld [vmem:[#allocation2 + $0x1a0] sm:$0xff]
      %v217 = vld [vmem:[#allocation2 + $0x1a8] sm:$0xff]
      %v218 = vld [vmem:[#allocation2 + $0x1b0] sm:$0xff]
      %v219 = vld [vmem:[#allocation2 + $0x1b8] sm:$0xff]
      %v220 = vld [vmem:[#allocation2 + $0x1c0] sm:$0xff]
      %v221 = vld [vmem:[#allocation2 + $0x1c8] sm:$0xff]
      %v222 = vld [vmem:[#allocation2 + $0x1d0] sm:$0xff]
      %v223 = vld [vmem:[#allocation2 + $0x1d8] sm:$0xff]
      %v224 = vld [vmem:[#allocation2 + $0x1e0] sm:$0xff]
      %v225 = vld [vmem:[#allocation2 + $0x1e8] sm:$0xff]
      %v226 = vld [vmem:[#allocation2 + $0x1f0] sm:$0xff]
      %v227 = vld [vmem:[#allocation2 + $0x1f8] sm:$0xff]
      %v292 = vunpack.c.l.b16 %v164
      %v293 = vunpack.c.h.b16 %v164
      %v294 = vunpack.c.l.b16 %v165
      %v295 = vunpack.c.h.b16 %v165
      %v296 = vunpack.c.l.b16 %v166
      %v297 = vunpack.c.h.b16 %v166
      %v298 = vunpack.c.l.b16 %v167
      %v299 = vunpack.c.h.b16 %v167
      %v300 = vunpack.c.l.b16 %v168
      %v301 = vunpack.c.h.b16 %v168
      %v302 = vunpack.c.l.b16 %v169
      %v303 = vunpack.c.h.b16 %v169
      %v304 = vunpack.c.l.b16 %v170
      %v305 = vunpack.c.h.b16 %v170
      %v306 = vunpack.c.l.b16 %v171
      %v307 = vunpack.c.h.b16 %v171
      %v308 = vunpack.c.l.b16 %v172
      %v309 = vunpack.c.h.b16 %v172
      %v310 = vunpack.c.l.b16 %v173
      %v311 = vunpack.c.h.b16 %v173
      %v312 = vunpack.c.l.b16 %v174
      %v313 = vunpack.c.h.b16 %v174
      %v314 = vunpack.c.l.b16 %v175
      %v315 = vunpack.c.h.b16 %v175
      %v316 = vunpack.c.l.b16 %v176
      %v317 = vunpack.c.h.b16 %v176
      %v318 = vunpack.c.l.b16 %v177
      %v319 = vunpack.c.h.b16 %v177
      %v320 = vunpack.c.l.b16 %v178
      %v321 = vunpack.c.h.b16 %v178
      %v322 = vunpack.c.l.b16 %v179
      %v323 = vunpack.c.h.b16 %v179
      %v324 = vunpack.c.l.b16 %v180
      %v325 = vunpack.c.h.b16 %v180
      %v326 = vunpack.c.l.b16 %v181
      %v327 = vunpack.c.h.b16 %v181
      %v328 = vunpack.c.l.b16 %v182
      %v329 = vunpack.c.h.b16 %v182
      %v330 = vunpack.c.l.b16 %v183
      %v331 = vunpack.c.h.b16 %v183
      %v332 = vunpack.c.l.b16 %v184
      %v333 = vunpack.c.h.b16 %v184
      %v334 = vunpack.c.l.b16 %v185
      %v335 = vunpack.c.h.b16 %v185
      %v336 = vunpack.c.l.b16 %v186
      %v337 = vunpack.c.h.b16 %v186
      %v338 = vunpack.c.l.b16 %v187
      %v339 = vunpack.c.h.b16 %v187
      %v340 = vunpack.c.l.b16 %v188
      %v341 = vunpack.c.h.b16 %v188
      %v342 = vunpack.c.l.b16 %v189
      %v343 = vunpack.c.h.b16 %v189
      %v344 = vunpack.c.l.b16 %v190
      %v345 = vunpack.c.h.b16 %v190
      %v346 = vunpack.c.l.b16 %v191
      %v347 = vunpack.c.h.b16 %v191
      %v348 = vunpack.c.l.b16 %v192
      %v349 = vunpack.c.h.b16 %v192
      %v350 = vunpack.c.l.b16 %v193
      %v351 = vunpack.c.h.b16 %v193
      %v352 = vunpack.c.l.b16 %v194
      %v353 = vunpack.c.h.b16 %v194
      %v354 = vunpack.c.l.b16 %v195
      %v355 = vunpack.c.h.b16 %v195
      %v356 = vunpack.c.l.b16 %v196
      %v357 = vunpack.c.h.b16 %v196
      %v358 = vunpack.c.l.b16 %v197
      %v359 = vunpack.c.h.b16 %v197
      %v360 = vunpack.c.l.b16 %v198
      %v361 = vunpack.c.h.b16 %v198
      %v362 = vunpack.c.l.b16 %v199
      %v363 = vunpack.c.h.b16 %v199
      %v364 = vunpack.c.l.b16 %v200
      %v365 = vunpack.c.h.b16 %v200
      %v366 = vunpack.c.l.b16 %v201
      %v367 = vunpack.c.h.b16 %v201
      %v368 = vunpack.c.l.b16 %v202
      %v369 = vunpack.c.h.b16 %v202
      %v370 = vunpack.c.l.b16 %v203
      %v371 = vunpack.c.h.b16 %v203
      %v372 = vunpack.c.l.b16 %v204
      %v373 = vunpack.c.h.b16 %v204
      %v374 = vunpack.c.l.b16 %v205
      %v375 = vunpack.c.h.b16 %v205
      %v376 = vunpack.c.l.b16 %v206
      %v377 = vunpack.c.h.b16 %v206
      %v378 = vunpack.c.l.b16 %v207
      %v379 = vunpack.c.h.b16 %v207
      %v380 = vunpack.c.l.b16 %v208
      %v381 = vunpack.c.h.b16 %v208
      %v382 = vunpack.c.l.b16 %v209
      %v383 = vunpack.c.h.b16 %v209
      %v384 = vunpack.c.l.b16 %v210
      %v385 = vunpack.c.h.b16 %v210
      %v386 = vunpack.c.l.b16 %v211
      %v387 = vunpack.c.h.b16 %v211
      %v388 = vunpack.c.l.b16 %v212
      %v389 = vunpack.c.h.b16 %v212
      %v390 = vunpack.c.l.b16 %v213
      %v391 = vunpack.c.h.b16 %v213
      %v392 = vunpack.c.l.b16 %v214
      %v393 = vunpack.c.h.b16 %v214
      %v394 = vunpack.c.l.b16 %v215
      %v395 = vunpack.c.h.b16 %v215
      %v396 = vunpack.c.l.b16 %v216
      %v397 = vunpack.c.h.b16 %v216
      %v398 = vunpack.c.l.b16 %v217
      %v399 = vunpack.c.h.b16 %v217
      %v400 = vunpack.c.l.b16 %v218
      %v401 = vunpack.c.h.b16 %v218
      %v402 = vunpack.c.l.b16 %v219
      %v403 = vunpack.c.h.b16 %v219
      %v404 = vunpack.c.l.b16 %v220
      %v405 = vunpack.c.h.b16 %v220
      %v406 = vunpack.c.l.b16 %v221
      %v407 = vunpack.c.h.b16 %v221
      %v408 = vunpack.c.l.b16 %v222
      %v409 = vunpack.c.h.b16 %v222
      %v410 = vunpack.c.l.b16 %v223
      %v411 = vunpack.c.h.b16 %v223
      %v412 = vunpack.c.l.b16 %v224
      %v413 = vunpack.c.h.b16 %v224
      %v414 = vunpack.c.l.b16 %v225
      %v415 = vunpack.c.h.b16 %v225
      %v416 = vunpack.c.l.b16 %v226
      %v417 = vunpack.c.h.b16 %v226
      %v418 = vunpack.c.l.b16 %v227
      %v419 = vunpack.c.h.b16 %v227
      %v420 = vpack.c.b16 %v296, %v292
      %v421 = vpack.c.b16 %v297, %v293
      %v422 = vpack.c.b16 %v298, %v294
      %v423 = vpack.c.b16 %v299, %v295
      %v424 = vpack.c.b16 %v304, %v300
      %v425 = vpack.c.b16 %v305, %v301
      %v426 = vpack.c.b16 %v306, %v302
      %v427 = vpack.c.b16 %v307, %v303
      %v428 = vpack.c.b16 %v312, %v308
      %v429 = vpack.c.b16 %v313, %v309
      %v430 = vpack.c.b16 %v314, %v310
      %v431 = vpack.c.b16 %v315, %v311
      %v432 = vpack.c.b16 %v320, %v316
      %v433 = vpack.c.b16 %v321, %v317
      %v434 = vpack.c.b16 %v322, %v318
      %v435 = vpack.c.b16 %v323, %v319
      %v436 = vpack.c.b16 %v328, %v324
      %v437 = vpack.c.b16 %v329, %v325
      %v438 = vpack.c.b16 %v330, %v326
      %v439 = vpack.c.b16 %v331, %v327
      %v440 = vpack.c.b16 %v336, %v332
      %v441 = vpack.c.b16 %v337, %v333
      %v442 = vpack.c.b16 %v338, %v334
      %v443 = vpack.c.b16 %v339, %v335
      %v444 = vpack.c.b16 %v344, %v340
      %v445 = vpack.c.b16 %v345, %v341
      %v446 = vpack.c.b16 %v346, %v342
      %v447 = vpack.c.b16 %v347, %v343
      %v448 = vpack.c.b16 %v352, %v348
      %v449 = vpack.c.b16 %v353, %v349
      %v450 = vpack.c.b16 %v354, %v350
      %v451 = vpack.c.b16 %v355, %v351
      %v452 = vpack.c.b16 %v360, %v356
      %v453 = vpack.c.b16 %v361, %v357
      %v454 = vpack.c.b16 %v362, %v358
      %v455 = vpack.c.b16 %v363, %v359
      %v456 = vpack.c.b16 %v368, %v364
      %v457 = vpack.c.b16 %v369, %v365
      %v458 = vpack.c.b16 %v370, %v366
      %v459 = vpack.c.b16 %v371, %v367
      %v460 = vpack.c.b16 %v376, %v372
      %v461 = vpack.c.b16 %v377, %v373
      %v462 = vpack.c.b16 %v378, %v374
      %v463 = vpack.c.b16 %v379, %v375
      %v464 = vpack.c.b16 %v384, %v380
      %v465 = vpack.c.b16 %v385, %v381
      %v466 = vpack.c.b16 %v386, %v382
      %v467 = vpack.c.b16 %v387, %v383
      %v468 = vpack.c.b16 %v392, %v388
      %v469 = vpack.c.b16 %v393, %v389
      %v470 = vpack.c.b16 %v394, %v390
      %v471 = vpack.c.b16 %v395, %v391
      %v472 = vpack.c.b16 %v400, %v396
      %v473 = vpack.c.b16 %v401, %v397
      %v474 = vpack.c.b16 %v402, %v398
      %v475 = vpack.c.b16 %v403, %v399
      %v476 = vpack.c.b16 %v408, %v404
      %v477 = vpack.c.b16 %v409, %v405
      %v478 = vpack.c.b16 %v410, %v406
      %v479 = vpack.c.b16 %v411, %v407
      %v480 = vpack.c.b16 %v416, %v412
      %v481 = vpack.c.b16 %v417, %v413
      %v482 = vpack.c.b16 %v418, %v414
      %v483 = vpack.c.b16 %v419, %v415
      %548 = vmatprep.subr.bf16.mxu0 %v449
      %549 = vmatpush1.bf16.msra.mxu0 %v448
      %550 = vmatprep.subr.bf16.mxu0 %v445
      %551 = vmatpush1.bf16.msra.mxu0 %v444
      %552 = vmatprep.subr.bf16.mxu0 %v441
      %553 = vmatpush1.bf16.msra.mxu0 %v440
      %554 = vmatprep.subr.bf16.mxu0 %v437
      %555 = vmatpush1.bf16.msra.mxu0 %v436
      %556 = vmatprep.subr.bf16.mxu0 %v433
      %557 = vmatpush1.bf16.msra.mxu0 %v432
      %558 = vmatprep.subr.bf16.mxu0 %v429
      %559 = vmatpush1.bf16.msra.mxu0 %v428
      %560 = vmatprep.subr.bf16.mxu0 %v425
      %561 = vmatpush1.bf16.msra.mxu0 %v424
      %562 = vmatprep.subr.bf16.mxu0 %v421
      %563 = vmatpush1.bf16.msra.mxu0 %v420
      %564 = vmatprep.subr.bf16.mxu0 %v481
      %565 = vmatpush2.bf16.msra.mxu0 %v480
      %566 = vmatprep.subr.bf16.mxu0 %v477
      %567 = vmatpush2.bf16.msra.mxu0 %v476
      %568 = vmatprep.subr.bf16.mxu0 %v473
      %569 = vmatpush2.bf16.msra.mxu0 %v472
      %570 = vmatprep.subr.bf16.mxu0 %v469
      %571 = vmatpush2.bf16.msra.mxu0 %v468
      %572 = vmatprep.subr.bf16.mxu0 %v465
      %573 = vmatpush2.bf16.msra.mxu0 %v464
      %574 = vmatprep.subr.bf16.mxu0 %v461
      %575 = vmatpush2.bf16.msra.mxu0 %v460
      %576 = vmatprep.subr.bf16.mxu0 %v457
      %577 = vmatpush2.bf16.msra.mxu0 %v456
      %578 = vmatprep.subr.bf16.mxu0 %v453
      %579 = vmatpush2.bf16.msra.mxu0 %v452
      %580 = vmatprep.mubr.bf16.mxu0 %v163
      %581 = vmatmul.mubr.bf16.gmra.mxu0 %v160
      %v582 = vpop.f32.mrf.mxu0
      %v583 = vadd.f32 %v79, %v582
      %v584 = vpop.f32.mrf.mxu0
      %v585 = vadd.f32 %v83, %v584
      %v586 = vpop.f32.mrf.mxu0
      %v587 = vpop.f32.mrf.mxu0
      %588 = vdwg.mxu0
      %589 = vmatprep.subr.bf16.mxu0 %v451
      %590 = vmatpush1.bf16.msra.mxu0 %v450
      %591 = vmatprep.subr.bf16.mxu0 %v447
      %592 = vmatpush1.bf16.msra.mxu0 %v446
      %593 = vmatprep.subr.bf16.mxu0 %v443
      %594 = vmatpush1.bf16.msra.mxu0 %v442
      %595 = vmatprep.subr.bf16.mxu0 %v439
      %596 = vmatpush1.bf16.msra.mxu0 %v438
      %597 = vmatprep.subr.bf16.mxu0 %v435
      %598 = vmatpush1.bf16.msra.mxu0 %v434
      %599 = vmatprep.subr.bf16.mxu0 %v431
      %600 = vmatpush1.bf16.msra.mxu0 %v430
      %601 = vmatprep.subr.bf16.mxu0 %v427
      %602 = vmatpush1.bf16.msra.mxu0 %v426
      %603 = vmatprep.subr.bf16.mxu0 %v423
      %604 = vmatpush1.bf16.msra.mxu0 %v422
      %605 = vmatprep.subr.bf16.mxu0 %v483
      %606 = vmatpush2.bf16.msra.mxu0 %v482
      %607 = vmatprep.subr.bf16.mxu0 %v479
      %608 = vmatpush2.bf16.msra.mxu0 %v478
      %609 = vmatprep.subr.bf16.mxu0 %v475
      %610 = vmatpush2.bf16.msra.mxu0 %v474
      %611 = vmatprep.subr.bf16.mxu0 %v471
      %612 = vmatpush2.bf16.msra.mxu0 %v470
      %613 = vmatprep.subr.bf16.mxu0 %v467
      %614 = vmatpush2.bf16.msra.mxu0 %v466
      %615 = vmatprep.subr.bf16.mxu0 %v463
      %616 = vmatpush2.bf16.msra.mxu0 %v462
      %617 = vmatprep.subr.bf16.mxu0 %v459
      %618 = vmatpush2.bf16.msra.mxu0 %v458
      %619 = vmatprep.subr.bf16.mxu0 %v455
      %620 = vmatpush2.bf16.msra.mxu0 %v454
      %621 = vmatprep.mubr.bf16.mxu0 %v163
      %622 = vmatmul.mubr.bf16.gmra.mxu0 %v160
      %v623 = vpop.f32.mrf.mxu0
      %v624 = vadd.f32 %v87, %v623
      %v625 = vpop.f32.mrf.mxu0
      %v626 = vadd.f32 %v91, %v625
      %v627 = vpop.f32.mrf.mxu0
      %v628 = vpop.f32.mrf.mxu0
      %629 = vdwg.mxu0
      %v630 = vxor.u32 %v583, 2147483648
      %v631 = vmul.f32 %v630, 1.442695
      %v632 = vpow.pop %v631
      %v633 = vadd.f32 %v632, 1.0
      %v634 = vrcp.pop %v633
      %v635 = vmul.f32 1.0, %v634
      %v636 = vxor.u32 %v585, 2147483648
      %v637 = vmul.f32 %v636, 1.442695
      %v638 = vpow.pop %v637
      %v639 = vadd.f32 %v638, 1.0
      %v640 = vrcp.pop %v639
      %v641 = vmul.f32 1.0, %v640
      %v642 = vtanh.pop %v624
      %v643 = vxor.u32 %v626, 2147483648
      %v644 = vmul.f32 %v643, 1.442695
      %v645 = vpow.pop %v644
      %v646 = vadd.f32 %v645, 1.0
      %v647 = vrcp.pop %v646
      %v648 = vmul.f32 1.0, %v647
      %v649 = vmul.f32 %v641, %v162
      %v650 = vmul.f32 %v635, %v642
      %v651 = vadd.f32 %v649, %v650
      %v652 = vtanh.pop %v651
      %v653 = vmul.f32 %v648, %v652
      %654 = vst [vmem:[%s8] sm:$0xff] %v653
      %655 = vst [vmem:[%s9] sm:$0xff] %v651
      %v656 = vpack.c.bf16 %v653, %v653
      %s657 = scalar_lea.vmem %s8, 8
      %v658 = vld [vmem:[%s657] sm:$0xff]
      %s659 = scalar_lea.vmem %s9, 8
      %v660 = vld [vmem:[%s659] sm:$0xff]
      %v661 = vpack.c.bf16 %v658, %v658
      %s662 = scalar_lea.vmem [#allocation2], 512
      %v663 = vld [vmem:[%s662] sm:$0xff]
      %v664 = vld [vmem:[%s662 + $0x8] sm:$0xff]
      %v665 = vld [vmem:[%s662 + $0x10] sm:$0xff]
      %v666 = vld [vmem:[%s662 + $0x18] sm:$0xff]
      %v667 = vld [vmem:[%s662 + $0x20] sm:$0xff]
      %v668 = vld [vmem:[%s662 + $0x28] sm:$0xff]
      %v669 = vld [vmem:[%s662 + $0x30] sm:$0xff]
      %v670 = vld [vmem:[%s662 + $0x38] sm:$0xff]
      %v671 = vld [vmem:[%s662 + $0x40] sm:$0xff]
      %v672 = vld [vmem:[%s662 + $0x48] sm:$0xff]
      %v673 = vld [vmem:[%s662 + $0x50] sm:$0xff]
      %v674 = vld [vmem:[%s662 + $0x58] sm:$0xff]
      %v675 = vld [vmem:[%s662 + $0x60] sm:$0xff]
      %v676 = vld [vmem:[%s662 + $0x68] sm:$0xff]
      %v677 = vld [vmem:[%s662 + $0x70] sm:$0xff]
      %v678 = vld [vmem:[%s662 + $0x78] sm:$0xff]
      %v679 = vld [vmem:[%s662 + $0x80] sm:$0xff]
      %v680 = vld [vmem:[%s662 + $0x88] sm:$0xff]
      %v681 = vld [vmem:[%s662 + $0x90] sm:$0xff]
      %v682 = vld [vmem:[%s662 + $0x98] sm:$0xff]
      %v683 = vld [vmem:[%s662 + $0xa0] sm:$0xff]
      %v684 = vld [vmem:[%s662 + $0xa8] sm:$0xff]
      %v685 = vld [vmem:[%s662 + $0xb0] sm:$0xff]
      %v686 = vld [vmem:[%s662 + $0xb8] sm:$0xff]
      %v687 = vld [vmem:[%s662 + $0xc0] sm:$0xff]
      %v688 = vld [vmem:[%s662 + $0xc8] sm:$0xff]
      %v689 = vld [vmem:[%s662 + $0xd0] sm:$0xff]
      %v690 = vld [vmem:[%s662 + $0xd8] sm:$0xff]
      %v691 = vld [vmem:[%s662 + $0xe0] sm:$0xff]
      %v692 = vld [vmem:[%s662 + $0xe8] sm:$0xff]
      %v693 = vld [vmem:[%s662 + $0xf0] sm:$0xff]
      %v694 = vld [vmem:[%s662 + $0xf8] sm:$0xff]
      %v695 = vld [vmem:[%s662 + $0x100] sm:$0xff]
      %v696 = vld [vmem:[%s662 + $0x108] sm:$0xff]
      %v697 = vld [vmem:[%s662 + $0x110] sm:$0xff]
      %v698 = vld [vmem:[%s662 + $0x118] sm:$0xff]
      %v699 = vld [vmem:[%s662 + $0x120] sm:$0xff]
      %v700 = vld [vmem:[%s662 + $0x128] sm:$0xff]
      %v701 = vld [vmem:[%s662 + $0x130] sm:$0xff]
      %v702 = vld [vmem:[%s662 + $0x138] sm:$0xff]
      %v703 = vld [vmem:[%s662 + $0x140] sm:$0xff]
      %v704 = vld [vmem:[%s662 + $0x148] sm:$0xff]
      %v705 = vld [vmem:[%s662 + $0x150] sm:$0xff]
      %v706 = vld [vmem:[%s662 + $0x158] sm:$0xff]
      %v707 = vld [vmem:[%s662 + $0x160] sm:$0xff]
      %v708 = vld [vmem:[%s662 + $0x168] sm:$0xff]
      %v709 = vld [vmem:[%s662 + $0x170] sm:$0xff]
      %v710 = vld [vmem:[%s662 + $0x178] sm:$0xff]
      %v711 = vld [vmem:[%s662 + $0x180] sm:$0xff]
      %v712 = vld [vmem:[%s662 + $0x188] sm:$0xff]
      %v713 = vld [vmem:[%s662 + $0x190] sm:$0xff]
      %v714 = vld [vmem:[%s662 + $0x198] sm:$0xff]
      %v715 = vld [vmem:[%s662 + $0x1a0] sm:$0xff]
      %v716 = vld [vmem:[%s662 + $0x1a8] sm:$0xff]
      %v717 = vld [vmem:[%s662 + $0x1b0] sm:$0xff]
      %v718 = vld [vmem:[%s662 + $0x1b8] sm:$0xff]
      %v719 = vld [vmem:[%s662 + $0x1c0] sm:$0xff]
      %v720 = vld [vmem:[%s662 + $0x1c8] sm:$0xff]
      %v721 = vld [vmem:[%s662 + $0x1d0] sm:$0xff]
      %v722 = vld [vmem:[%s662 + $0x1d8] sm:$0xff]
      %v723 = vld [vmem:[%s662 + $0x1e0] sm:$0xff]
      %v724 = vld [vmem:[%s662 + $0x1e8] sm:$0xff]
      %v725 = vld [vmem:[%s662 + $0x1f0] sm:$0xff]
      %v726 = vld [vmem:[%s662 + $0x1f8] sm:$0xff]
      %v791 = vunpack.c.l.b16 %v663
      %v792 = vunpack.c.h.b16 %v663
      %v793 = vunpack.c.l.b16 %v664
      %v794 = vunpack.c.h.b16 %v664
      %v795 = vunpack.c.l.b16 %v665
      %v796 = vunpack.c.h.b16 %v665
      %v797 = vunpack.c.l.b16 %v666
      %v798 = vunpack.c.h.b16 %v666
      %v799 = vunpack.c.l.b16 %v667
      %v800 = vunpack.c.h.b16 %v667
      %v801 = vunpack.c.l.b16 %v668
      %v802 = vunpack.c.h.b16 %v668
      %v803 = vunpack.c.l.b16 %v669
      %v804 = vunpack.c.h.b16 %v669
      %v805 = vunpack.c.l.b16 %v670
      %v806 = vunpack.c.h.b16 %v670
      %v807 = vunpack.c.l.b16 %v671
      %v808 = vunpack.c.h.b16 %v671
      %v809 = vunpack.c.l.b16 %v672
      %v810 = vunpack.c.h.b16 %v672
      %v811 = vunpack.c.l.b16 %v673
      %v812 = vunpack.c.h.b16 %v673
      %v813 = vunpack.c.l.b16 %v674
      %v814 = vunpack.c.h.b16 %v674
      %v815 = vunpack.c.l.b16 %v675
      %v816 = vunpack.c.h.b16 %v675
      %v817 = vunpack.c.l.b16 %v676
      %v818 = vunpack.c.h.b16 %v676
      %v819 = vunpack.c.l.b16 %v677
      %v820 = vunpack.c.h.b16 %v677
      %v821 = vunpack.c.l.b16 %v678
      %v822 = vunpack.c.h.b16 %v678
      %v823 = vunpack.c.l.b16 %v679
      %v824 = vunpack.c.h.b16 %v679
      %v825 = vunpack.c.l.b16 %v680
      %v826 = vunpack.c.h.b16 %v680
      %v827 = vunpack.c.l.b16 %v681
      %v828 = vunpack.c.h.b16 %v681
      %v829 = vunpack.c.l.b16 %v682
      %v830 = vunpack.c.h.b16 %v682
      %v831 = vunpack.c.l.b16 %v683
      %v832 = vunpack.c.h.b16 %v683
      %v833 = vunpack.c.l.b16 %v684
      %v834 = vunpack.c.h.b16 %v684
      %v835 = vunpack.c.l.b16 %v685
      %v836 = vunpack.c.h.b16 %v685
      %v837 = vunpack.c.l.b16 %v686
      %v838 = vunpack.c.h.b16 %v686
      %v839 = vunpack.c.l.b16 %v687
      %v840 = vunpack.c.h.b16 %v687
      %v841 = vunpack.c.l.b16 %v688
      %v842 = vunpack.c.h.b16 %v688
      %v843 = vunpack.c.l.b16 %v689
      %v844 = vunpack.c.h.b16 %v689
      %v845 = vunpack.c.l.b16 %v690
      %v846 = vunpack.c.h.b16 %v690
      %v847 = vunpack.c.l.b16 %v691
      %v848 = vunpack.c.h.b16 %v691
      %v849 = vunpack.c.l.b16 %v692
      %v850 = vunpack.c.h.b16 %v692
      %v851 = vunpack.c.l.b16 %v693
      %v852 = vunpack.c.h.b16 %v693
      %v853 = vunpack.c.l.b16 %v694
      %v854 = vunpack.c.h.b16 %v694
      %v855 = vunpack.c.l.b16 %v695
      %v856 = vunpack.c.h.b16 %v695
      %v857 = vunpack.c.l.b16 %v696
      %v858 = vunpack.c.h.b16 %v696
      %v859 = vunpack.c.l.b16 %v697
      %v860 = vunpack.c.h.b16 %v697
      %v861 = vunpack.c.l.b16 %v698
      %v862 = vunpack.c.h.b16 %v698
      %v863 = vunpack.c.l.b16 %v699
      %v864 = vunpack.c.h.b16 %v699
      %v865 = vunpack.c.l.b16 %v700
      %v866 = vunpack.c.h.b16 %v700
      %v867 = vunpack.c.l.b16 %v701
      %v868 = vunpack.c.h.b16 %v701
      %v869 = vunpack.c.l.b16 %v702
      %v870 = vunpack.c.h.b16 %v702
      %v871 = vunpack.c.l.b16 %v703
      %v872 = vunpack.c.h.b16 %v703
      %v873 = vunpack.c.l.b16 %v704
      %v874 = vunpack.c.h.b16 %v704
      %v875 = vunpack.c.l.b16 %v705
      %v876 = vunpack.c.h.b16 %v705
      %v877 = vunpack.c.l.b16 %v706
      %v878 = vunpack.c.h.b16 %v706
      %v879 = vunpack.c.l.b16 %v707
      %v880 = vunpack.c.h.b16 %v707
      %v881 = vunpack.c.l.b16 %v708
      %v882 = vunpack.c.h.b16 %v708
      %v883 = vunpack.c.l.b16 %v709
      %v884 = vunpack.c.h.b16 %v709
      %v885 = vunpack.c.l.b16 %v710
      %v886 = vunpack.c.h.b16 %v710
      %v887 = vunpack.c.l.b16 %v711
      %v888 = vunpack.c.h.b16 %v711
      %v889 = vunpack.c.l.b16 %v712
      %v890 = vunpack.c.h.b16 %v712
      %v891 = vunpack.c.l.b16 %v713
      %v892 = vunpack.c.h.b16 %v713
      %v893 = vunpack.c.l.b16 %v714
      %v894 = vunpack.c.h.b16 %v714
      %v895 = vunpack.c.l.b16 %v715
      %v896 = vunpack.c.h.b16 %v715
      %v897 = vunpack.c.l.b16 %v716
      %v898 = vunpack.c.h.b16 %v716
      %v899 = vunpack.c.l.b16 %v717
      %v900 = vunpack.c.h.b16 %v717
      %v901 = vunpack.c.l.b16 %v718
      %v902 = vunpack.c.h.b16 %v718
      %v903 = vunpack.c.l.b16 %v719
      %v904 = vunpack.c.h.b16 %v719
      %v905 = vunpack.c.l.b16 %v720
      %v906 = vunpack.c.h.b16 %v720
      %v907 = vunpack.c.l.b16 %v721
      %v908 = vunpack.c.h.b16 %v721
      %v909 = vunpack.c.l.b16 %v722
      %v910 = vunpack.c.h.b16 %v722
      %v911 = vunpack.c.l.b16 %v723
      %v912 = vunpack.c.h.b16 %v723
      %v913 = vunpack.c.l.b16 %v724
      %v914 = vunpack.c.h.b16 %v724
      %v915 = vunpack.c.l.b16 %v725
      %v916 = vunpack.c.h.b16 %v725
      %v917 = vunpack.c.l.b16 %v726
      %v918 = vunpack.c.h.b16 %v726
      %v919 = vpack.c.b16 %v795, %v791
      %v920 = vpack.c.b16 %v796, %v792
      %v921 = vpack.c.b16 %v797, %v793
      %v922 = vpack.c.b16 %v798, %v794
      %v923 = vpack.c.b16 %v803, %v799
      %v924 = vpack.c.b16 %v804, %v800
      %v925 = vpack.c.b16 %v805, %v801
      %v926 = vpack.c.b16 %v806, %v802
      %v927 = vpack.c.b16 %v811, %v807
      %v928 = vpack.c.b16 %v812, %v808
      %v929 = vpack.c.b16 %v813, %v809
      %v930 = vpack.c.b16 %v814, %v810
      %v931 = vpack.c.b16 %v819, %v815
      %v932 = vpack.c.b16 %v820, %v816
      %v933 = vpack.c.b16 %v821, %v817
      %v934 = vpack.c.b16 %v822, %v818
      %v935 = vpack.c.b16 %v827, %v823
      %v936 = vpack.c.b16 %v828, %v824
      %v937 = vpack.c.b16 %v829, %v825
      %v938 = vpack.c.b16 %v830, %v826
      %v939 = vpack.c.b16 %v835, %v831
      %v940 = vpack.c.b16 %v836, %v832
      %v941 = vpack.c.b16 %v837, %v833
      %v942 = vpack.c.b16 %v838, %v834
      %v943 = vpack.c.b16 %v843, %v839
      %v944 = vpack.c.b16 %v844, %v840
      %v945 = vpack.c.b16 %v845, %v841
      %v946 = vpack.c.b16 %v846, %v842
      %v947 = vpack.c.b16 %v851, %v847
      %v948 = vpack.c.b16 %v852, %v848
      %v949 = vpack.c.b16 %v853, %v849
      %v950 = vpack.c.b16 %v854, %v850
      %v951 = vpack.c.b16 %v859, %v855
      %v952 = vpack.c.b16 %v860, %v856
      %v953 = vpack.c.b16 %v861, %v857
      %v954 = vpack.c.b16 %v862, %v858
      %v955 = vpack.c.b16 %v867, %v863
      %v956 = vpack.c.b16 %v868, %v864
      %v957 = vpack.c.b16 %v869, %v865
      %v958 = vpack.c.b16 %v870, %v866
      %v959 = vpack.c.b16 %v875, %v871
      %v960 = vpack.c.b16 %v876, %v872
      %v961 = vpack.c.b16 %v877, %v873
      %v962 = vpack.c.b16 %v878, %v874
      %v963 = vpack.c.b16 %v883, %v879
      %v964 = vpack.c.b16 %v884, %v880
      %v965 = vpack.c.b16 %v885, %v881
      %v966 = vpack.c.b16 %v886, %v882
      %v967 = vpack.c.b16 %v891, %v887
      %v968 = vpack.c.b16 %v892, %v888
      %v969 = vpack.c.b16 %v893, %v889
      %v970 = vpack.c.b16 %v894, %v890
      %v971 = vpack.c.b16 %v899, %v895
      %v972 = vpack.c.b16 %v900, %v896
      %v973 = vpack.c.b16 %v901, %v897
      %v974 = vpack.c.b16 %v902, %v898
      %v975 = vpack.c.b16 %v907, %v903
      %v976 = vpack.c.b16 %v908, %v904
      %v977 = vpack.c.b16 %v909, %v905
      %v978 = vpack.c.b16 %v910, %v906
      %v979 = vpack.c.b16 %v915, %v911
      %v980 = vpack.c.b16 %v916, %v912
      %v981 = vpack.c.b16 %v917, %v913
      %v982 = vpack.c.b16 %v918, %v914
      %1047 = vmatprep.subr.bf16.mxu0 %v948
      %1048 = vmatpush1.bf16.msra.mxu0 %v947
      %1049 = vmatprep.subr.bf16.mxu0 %v944
      %1050 = vmatpush1.bf16.msra.mxu0 %v943
      %1051 = vmatprep.subr.bf16.mxu0 %v940
      %1052 = vmatpush1.bf16.msra.mxu0 %v939
      %1053 = vmatprep.subr.bf16.mxu0 %v936
      %1054 = vmatpush1.bf16.msra.mxu0 %v935
      %1055 = vmatprep.subr.bf16.mxu0 %v932
      %1056 = vmatpush1.bf16.msra.mxu0 %v931
      %1057 = vmatprep.subr.bf16.mxu0 %v928
      %1058 = vmatpush1.bf16.msra.mxu0 %v927
      %1059 = vmatprep.subr.bf16.mxu0 %v924
      %1060 = vmatpush1.bf16.msra.mxu0 %v923
      %1061 = vmatprep.subr.bf16.mxu0 %v920
      %1062 = vmatpush1.bf16.msra.mxu0 %v919
      %1063 = vmatprep.subr.bf16.mxu0 %v980
      %1064 = vmatpush2.bf16.msra.mxu0 %v979
      %1065 = vmatprep.subr.bf16.mxu0 %v976
      %1066 = vmatpush2.bf16.msra.mxu0 %v975
      %1067 = vmatprep.subr.bf16.mxu0 %v972
      %1068 = vmatpush2.bf16.msra.mxu0 %v971
      %1069 = vmatprep.subr.bf16.mxu0 %v968
      %1070 = vmatpush2.bf16.msra.mxu0 %v967
      %1071 = vmatprep.subr.bf16.mxu0 %v964
      %1072 = vmatpush2.bf16.msra.mxu0 %v963
      %1073 = vmatprep.subr.bf16.mxu0 %v960
      %1074 = vmatpush2.bf16.msra.mxu0 %v959
      %1075 = vmatprep.subr.bf16.mxu0 %v956
      %1076 = vmatpush2.bf16.msra.mxu0 %v955
      %1077 = vmatprep.subr.bf16.mxu0 %v952
      %1078 = vmatpush2.bf16.msra.mxu0 %v951
      %1079 = vmatprep.mubr.bf16.mxu0 %v661
      %1080 = vmatmul.mubr.bf16.gmra.mxu0 %v656
      %v1081 = vpop.f32.mrf.mxu0
      %v1082 = vadd.f32 %v102, %v1081
      %v1083 = vpop.f32.mrf.mxu0
      %v1084 = vadd.f32 %v106, %v1083
      %v1085 = vpop.f32.mrf.mxu0
      %v1086 = vpop.f32.mrf.mxu0
      %1087 = vdwg.mxu0
      %1088 = vmatprep.subr.bf16.mxu0 %v950
      %1089 = vmatpush1.bf16.msra.mxu0 %v949
      %1090 = vmatprep.subr.bf16.mxu0 %v946
      %1091 = vmatpush1.bf16.msra.mxu0 %v945
      %1092 = vmatprep.subr.bf16.mxu0 %v942
      %1093 = vmatpush1.bf16.msra.mxu0 %v941
      %1094 = vmatprep.subr.bf16.mxu0 %v938
      %1095 = vmatpush1.bf16.msra.mxu0 %v937
      %1096 = vmatprep.subr.bf16.mxu0 %v934
      %1097 = vmatpush1.bf16.msra.mxu0 %v933
      %1098 = vmatprep.subr.bf16.mxu0 %v930
      %1099 = vmatpush1.bf16.msra.mxu0 %v929
      %1100 = vmatprep.subr.bf16.mxu0 %v926
      %1101 = vmatpush1.bf16.msra.mxu0 %v925
      %1102 = vmatprep.subr.bf16.mxu0 %v922
      %1103 = vmatpush1.bf16.msra.mxu0 %v921
      %1104 = vmatprep.subr.bf16.mxu0 %v982
      %1105 = vmatpush2.bf16.msra.mxu0 %v981
      %1106 = vmatprep.subr.bf16.mxu0 %v978
      %1107 = vmatpush2.bf16.msra.mxu0 %v977
      %1108 = vmatprep.subr.bf16.mxu0 %v974
      %1109 = vmatpush2.bf16.msra.mxu0 %v973
      %1110 = vmatprep.subr.bf16.mxu0 %v970
      %1111 = vmatpush2.bf16.msra.mxu0 %v969
      %1112 = vmatprep.subr.bf16.mxu0 %v966
      %1113 = vmatpush2.bf16.msra.mxu0 %v965
      %1114 = vmatprep.subr.bf16.mxu0 %v962
      %1115 = vmatpush2.bf16.msra.mxu0 %v961
      %1116 = vmatprep.subr.bf16.mxu0 %v958
      %1117 = vmatpush2.bf16.msra.mxu0 %v957
      %1118 = vmatprep.subr.bf16.mxu0 %v954
      %1119 = vmatpush2.bf16.msra.mxu0 %v953
      %1120 = vmatprep.mubr.bf16.mxu0 %v661
      %1121 = vmatmul.mubr.bf16.gmra.mxu0 %v656
      %v1122 = vpop.f32.mrf.mxu0
      %v1123 = vadd.f32 %v110, %v1122
      %v1124 = vpop.f32.mrf.mxu0
      %v1125 = vadd.f32 %v114, %v1124
      %v1126 = vpop.f32.mrf.mxu0
      %v1127 = vpop.f32.mrf.mxu0
      %1128 = vdwg.mxu0
      %v1129 = vxor.u32 %v1082, 2147483648
      %v1130 = vmul.f32 %v1129, 1.442695
      %v1131 = vpow.pop %v1130
      %v1132 = vadd.f32 %v1131, 1.0
      %v1133 = vrcp.pop %v1132
      %v1134 = vmul.f32 1.0, %v1133
      %v1135 = vxor.u32 %v1084, 2147483648
      %v1136 = vmul.f32 %v1135, 1.442695
      %v1137 = vpow.pop %v1136
      %v1138 = vadd.f32 %v1137, 1.0
      %v1139 = vrcp.pop %v1138
      %v1140 = vmul.f32 1.0, %v1139
      %v1141 = vtanh.pop %v1123
      %v1142 = vxor.u32 %v1125, 2147483648
      %v1143 = vmul.f32 %v1142, 1.442695
      %v1144 = vpow.pop %v1143
      %v1145 = vadd.f32 %v1144, 1.0
      %v1146 = vrcp.pop %v1145
      %v1147 = vmul.f32 1.0, %v1146
      %v1148 = vmul.f32 %v1140, %v660
      %v1149 = vmul.f32 %v1134, %v1141
      %v1150 = vadd.f32 %v1148, %v1149
      %v1151 = vtanh.pop %v1150
      %v1152 = vmul.f32 %v1147, %v1151
      %1153 = vst [vmem:[%s657] sm:$0xff] %v1152
      %1154 = vst [vmem:[%s659] sm:$0xff] %v1150
      %v1155 = vpack.c.bf16 %v1152, %v1152
      %s1156 = scalar_lea.vmem %s8, 16
      %v1157 = vld [vmem:[%s1156] sm:$0xff]
      %s1158 = scalar_lea.vmem %s9, 16
      %v1159 = vld [vmem:[%s1158] sm:$0xff]
      %v1160 = vpack.c.bf16 %v1157, %v1157
      %s1161 = scalar_lea.vmem [#allocation2], 1024
      %v1162 = vld [vmem:[%s1161] sm:$0xff]
      %v1163 = vld [vmem:[%s1161 + $0x8] sm:$0xff]
      %v1164 = vld [vmem:[%s1161 + $0x10] sm:$0xff]
      %v1165 = vld [vmem:[%s1161 + $0x18] sm:$0xff]
      %v1166 = vld [vmem:[%s1161 + $0x20] sm:$0xff]
      %v1167 = vld [vmem:[%s1161 + $0x28] sm:$0xff]
      %v1168 = vld [vmem:[%s1161 + $0x30] sm:$0xff]
      %v1169 = vld [vmem:[%s1161 + $0x38] sm:$0xff]
      %v1170 = vld [vmem:[%s1161 + $0x40] sm:$0xff]
      %v1171 = vld [vmem:[%s1161 + $0x48] sm:$0xff]
      %v1172 = vld [vmem:[%s1161 + $0x50] sm:$0xff]
      %v1173 = vld [vmem:[%s1161 + $0x58] sm:$0xff]
      %v1174 = vld [vmem:[%s1161 + $0x60] sm:$0xff]
      %v1175 = vld [vmem:[%s1161 + $0x68] sm:$0xff]
      %v1176 = vld [vmem:[%s1161 + $0x70] sm:$0xff]
      %v1177 = vld [vmem:[%s1161 + $0x78] sm:$0xff]
      %v1178 = vld [vmem:[%s1161 + $0x80] sm:$0xff]
      %v1179 = vld [vmem:[%s1161 + $0x88] sm:$0xff]
      %v1180 = vld [vmem:[%s1161 + $0x90] sm:$0xff]
      %v1181 = vld [vmem:[%s1161 + $0x98] sm:$0xff]
      %v1182 = vld [vmem:[%s1161 + $0xa0] sm:$0xff]
      %v1183 = vld [vmem:[%s1161 + $0xa8] sm:$0xff]
      %v1184 = vld [vmem:[%s1161 + $0xb0] sm:$0xff]
      %v1185 = vld [vmem:[%s1161 + $0xb8] sm:$0xff]
      %v1186 = vld [vmem:[%s1161 + $0xc0] sm:$0xff]
      %v1187 = vld [vmem:[%s1161 + $0xc8] sm:$0xff]
      %v1188 = vld [vmem:[%s1161 + $0xd0] sm:$0xff]
      %v1189 = vld [vmem:[%s1161 + $0xd8] sm:$0xff]
      %v1190 = vld [vmem:[%s1161 + $0xe0] sm:$0xff]
      %v1191 = vld [vmem:[%s1161 + $0xe8] sm:$0xff]
      %v1192 = vld [vmem:[%s1161 + $0xf0] sm:$0xff]
      %v1193 = vld [vmem:[%s1161 + $0xf8] sm:$0xff]
      %v1194 = vld [vmem:[%s1161 + $0x100] sm:$0xff]
      %v1195 = vld [vmem:[%s1161 + $0x108] sm:$0xff]
      %v1196 = vld [vmem:[%s1161 + $0x110] sm:$0xff]
      %v1197 = vld [vmem:[%s1161 + $0x118] sm:$0xff]
      %v1198 = vld [vmem:[%s1161 + $0x120] sm:$0xff]
      %v1199 = vld [vmem:[%s1161 + $0x128] sm:$0xff]
      %v1200 = vld [vmem:[%s1161 + $0x130] sm:$0xff]
      %v1201 = vld [vmem:[%s1161 + $0x138] sm:$0xff]
      %v1202 = vld [vmem:[%s1161 + $0x140] sm:$0xff]
      %v1203 = vld [vmem:[%s1161 + $0x148] sm:$0xff]
      %v1204 = vld [vmem:[%s1161 + $0x150] sm:$0xff]
      %v1205 = vld [vmem:[%s1161 + $0x158] sm:$0xff]
      %v1206 = vld [vmem:[%s1161 + $0x160] sm:$0xff]
      %v1207 = vld [vmem:[%s1161 + $0x168] sm:$0xff]
      %v1208 = vld [vmem:[%s1161 + $0x170] sm:$0xff]
      %v1209 = vld [vmem:[%s1161 + $0x178] sm:$0xff]
      %v1210 = vld [vmem:[%s1161 + $0x180] sm:$0xff]
      %v1211 = vld [vmem:[%s1161 + $0x188] sm:$0xff]
      %v1212 = vld [vmem:[%s1161 + $0x190] sm:$0xff]
      %v1213 = vld [vmem:[%s1161 + $0x198] sm:$0xff]
      %v1214 = vld [vmem:[%s1161 + $0x1a0] sm:$0xff]
      %v1215 = vld [vmem:[%s1161 + $0x1a8] sm:$0xff]
      %v1216 = vld [vmem:[%s1161 + $0x1b0] sm:$0xff]
      %v1217 = vld [vmem:[%s1161 + $0x1b8] sm:$0xff]
      %v1218 = vld [vmem:[%s1161 + $0x1c0] sm:$0xff]
      %v1219 = vld [vmem:[%s1161 + $0x1c8] sm:$0xff]
      %v1220 = vld [vmem:[%s1161 + $0x1d0] sm:$0xff]
      %v1221 = vld [vmem:[%s1161 + $0x1d8] sm:$0xff]
      %v1222 = vld [vmem:[%s1161 + $0x1e0] sm:$0xff]
      %v1223 = vld [vmem:[%s1161 + $0x1e8] sm:$0xff]
      %v1224 = vld [vmem:[%s1161 + $0x1f0] sm:$0xff]
      %v1225 = vld [vmem:[%s1161 + $0x1f8] sm:$0xff]
      %v1290 = vunpack.c.l.b16 %v1162
      %v1291 = vunpack.c.h.b16 %v1162
      %v1292 = vunpack.c.l.b16 %v1163
      %v1293 = vunpack.c.h.b16 %v1163
      %v1294 = vunpack.c.l.b16 %v1164
      %v1295 = vunpack.c.h.b16 %v1164
      %v1296 = vunpack.c.l.b16 %v1165
      %v1297 = vunpack.c.h.b16 %v1165
      %v1298 = vunpack.c.l.b16 %v1166
      %v1299 = vunpack.c.h.b16 %v1166
      %v1300 = vunpack.c.l.b16 %v1167
      %v1301 = vunpack.c.h.b16 %v1167
      %v1302 = vunpack.c.l.b16 %v1168
      %v1303 = vunpack.c.h.b16 %v1168
      %v1304 = vunpack.c.l.b16 %v1169
      %v1305 = vunpack.c.h.b16 %v1169
      %v1306 = vunpack.c.l.b16 %v1170
      %v1307 = vunpack.c.h.b16 %v1170
      %v1308 = vunpack.c.l.b16 %v1171
      %v1309 = vunpack.c.h.b16 %v1171
      %v1310 = vunpack.c.l.b16 %v1172
      %v1311 = vunpack.c.h.b16 %v1172
      %v1312 = vunpack.c.l.b16 %v1173
      %v1313 = vunpack.c.h.b16 %v1173
      %v1314 = vunpack.c.l.b16 %v1174
      %v1315 = vunpack.c.h.b16 %v1174
      %v1316 = vunpack.c.l.b16 %v1175
      %v1317 = vunpack.c.h.b16 %v1175
      %v1318 = vunpack.c.l.b16 %v1176
      %v1319 = vunpack.c.h.b16 %v1176
      %v1320 = vunpack.c.l.b16 %v1177
      %v1321 = vunpack.c.h.b16 %v1177
      %v1322 = vunpack.c.l.b16 %v1178
      %v1323 = vunpack.c.h.b16 %v1178
      %v1324 = vunpack.c.l.b16 %v1179
      %v1325 = vunpack.c.h.b16 %v1179
      %v1326 = vunpack.c.l.b16 %v1180
      %v1327 = vunpack.c.h.b16 %v1180
      %v1328 = vunpack.c.l.b16 %v1181
      %v1329 = vunpack.c.h.b16 %v1181
      %v1330 = vunpack.c.l.b16 %v1182
      %v1331 = vunpack.c.h.b16 %v1182
      %v1332 = vunpack.c.l.b16 %v1183
      %v1333 = vunpack.c.h.b16 %v1183
      %v1334 = vunpack.c.l.b16 %v1184
      %v1335 = vunpack.c.h.b16 %v1184
      %v1336 = vunpack.c.l.b16 %v1185
      %v1337 = vunpack.c.h.b16 %v1185
      %v1338 = vunpack.c.l.b16 %v1186
      %v1339 = vunpack.c.h.b16 %v1186
      %v1340 = vunpack.c.l.b16 %v1187
      %v1341 = vunpack.c.h.b16 %v1187
      %v1342 = vunpack.c.l.b16 %v1188
      %v1343 = vunpack.c.h.b16 %v1188
      %v1344 = vunpack.c.l.b16 %v1189
      %v1345 = vunpack.c.h.b16 %v1189
      %v1346 = vunpack.c.l.b16 %v1190
      %v1347 = vunpack.c.h.b16 %v1190
      %v1348 = vunpack.c.l.b16 %v1191
      %v1349 = vunpack.c.h.b16 %v1191
      %v1350 = vunpack.c.l.b16 %v1192
      %v1351 = vunpack.c.h.b16 %v1192
      %v1352 = vunpack.c.l.b16 %v1193
      %v1353 = vunpack.c.h.b16 %v1193
      %v1354 = vunpack.c.l.b16 %v1194
      %v1355 = vunpack.c.h.b16 %v1194
      %v1356 = vunpack.c.l.b16 %v1195
      %v1357 = vunpack.c.h.b16 %v1195
      %v1358 = vunpack.c.l.b16 %v1196
      %v1359 = vunpack.c.h.b16 %v1196
      %v1360 = vunpack.c.l.b16 %v1197
      %v1361 = vunpack.c.h.b16 %v1197
      %v1362 = vunpack.c.l.b16 %v1198
      %v1363 = vunpack.c.h.b16 %v1198
      %v1364 = vunpack.c.l.b16 %v1199
      %v1365 = vunpack.c.h.b16 %v1199
      %v1366 = vunpack.c.l.b16 %v1200
      %v1367 = vunpack.c.h.b16 %v1200
      %v1368 = vunpack.c.l.b16 %v1201
      %v1369 = vunpack.c.h.b16 %v1201
      %v1370 = vunpack.c.l.b16 %v1202
      %v1371 = vunpack.c.h.b16 %v1202
      %v1372 = vunpack.c.l.b16 %v1203
      %v1373 = vunpack.c.h.b16 %v1203
      %v1374 = vunpack.c.l.b16 %v1204
      %v1375 = vunpack.c.h.b16 %v1204
      %v1376 = vunpack.c.l.b16 %v1205
      %v1377 = vunpack.c.h.b16 %v1205
      %v1378 = vunpack.c.l.b16 %v1206
      %v1379 = vunpack.c.h.b16 %v1206
      %v1380 = vunpack.c.l.b16 %v1207
      %v1381 = vunpack.c.h.b16 %v1207
      %v1382 = vunpack.c.l.b16 %v1208
      %v1383 = vunpack.c.h.b16 %v1208
      %v1384 = vunpack.c.l.b16 %v1209
      %v1385 = vunpack.c.h.b16 %v1209
      %v1386 = vunpack.c.l.b16 %v1210
      %v1387 = vunpack.c.h.b16 %v1210
      %v1388 = vunpack.c.l.b16 %v1211
      %v1389 = vunpack.c.h.b16 %v1211
      %v1390 = vunpack.c.l.b16 %v1212
      %v1391 = vunpack.c.h.b16 %v1212
      %v1392 = vunpack.c.l.b16 %v1213
      %v1393 = vunpack.c.h.b16 %v1213
      %v1394 = vunpack.c.l.b16 %v1214
      %v1395 = vunpack.c.h.b16 %v1214
      %v1396 = vunpack.c.l.b16 %v1215
      %v1397 = vunpack.c.h.b16 %v1215
      %v1398 = vunpack.c.l.b16 %v1216
      %v1399 = vunpack.c.h.b16 %v1216
      %v1400 = vunpack.c.l.b16 %v1217
      %v1401 = vunpack.c.h.b16 %v1217
      %v1402 = vunpack.c.l.b16 %v1218
      %v1403 = vunpack.c.h.b16 %v1218
      %v1404 = vunpack.c.l.b16 %v1219
      %v1405 = vunpack.c.h.b16 %v1219
      %v1406 = vunpack.c.l.b16 %v1220
      %v1407 = vunpack.c.h.b16 %v1220
      %v1408 = vunpack.c.l.b16 %v1221
      %v1409 = vunpack.c.h.b16 %v1221
      %v1410 = vunpack.c.l.b16 %v1222
      %v1411 = vunpack.c.h.b16 %v1222
      %v1412 = vunpack.c.l.b16 %v1223
      %v1413 = vunpack.c.h.b16 %v1223
      %v1414 = vunpack.c.l.b16 %v1224
      %v1415 = vunpack.c.h.b16 %v1224
      %v1416 = vunpack.c.l.b16 %v1225
      %v1417 = vunpack.c.h.b16 %v1225
      %v1418 = vpack.c.b16 %v1294, %v1290
      %v1419 = vpack.c.b16 %v1295, %v1291
      %v1420 = vpack.c.b16 %v1296, %v1292
      %v1421 = vpack.c.b16 %v1297, %v1293
      %v1422 = vpack.c.b16 %v1302, %v1298
      %v1423 = vpack.c.b16 %v1303, %v1299
      %v1424 = vpack.c.b16 %v1304, %v1300
      %v1425 = vpack.c.b16 %v1305, %v1301
      %v1426 = vpack.c.b16 %v1310, %v1306
      %v1427 = vpack.c.b16 %v1311, %v1307
      %v1428 = vpack.c.b16 %v1312, %v1308
      %v1429 = vpack.c.b16 %v1313, %v1309
      %v1430 = vpack.c.b16 %v1318, %v1314
      %v1431 = vpack.c.b16 %v1319, %v1315
      %v1432 = vpack.c.b16 %v1320, %v1316
      %v1433 = vpack.c.b16 %v1321, %v1317
      %v1434 = vpack.c.b16 %v1326, %v1322
      %v1435 = vpack.c.b16 %v1327, %v1323
      %v1436 = vpack.c.b16 %v1328, %v1324
      %v1437 = vpack.c.b16 %v1329, %v1325
      %v1438 = vpack.c.b16 %v1334, %v1330
      %v1439 = vpack.c.b16 %v1335, %v1331
      %v1440 = vpack.c.b16 %v1336, %v1332
      %v1441 = vpack.c.b16 %v1337, %v1333
      %v1442 = vpack.c.b16 %v1342, %v1338
      %v1443 = vpack.c.b16 %v1343, %v1339
      %v1444 = vpack.c.b16 %v1344, %v1340
      %v1445 = vpack.c.b16 %v1345, %v1341
      %v1446 = vpack.c.b16 %v1350, %v1346
      %v1447 = vpack.c.b16 %v1351, %v1347
      %v1448 = vpack.c.b16 %v1352, %v1348
      %v1449 = vpack.c.b16 %v1353, %v1349
      %v1450 = vpack.c.b16 %v1358, %v1354
      %v1451 = vpack.c.b16 %v1359, %v1355
      %v1452 = vpack.c.b16 %v1360, %v1356
      %v1453 = vpack.c.b16 %v1361, %v1357
      %v1454 = vpack.c.b16 %v1366, %v1362
      %v1455 = vpack.c.b16 %v1367, %v1363
      %v1456 = vpack.c.b16 %v1368, %v1364
      %v1457 = vpack.c.b16 %v1369, %v1365
      %v1458 = vpack.c.b16 %v1374, %v1370
      %v1459 = vpack.c.b16 %v1375, %v1371
      %v1460 = vpack.c.b16 %v1376, %v1372
      %v1461 = vpack.c.b16 %v1377, %v1373
      %v1462 = vpack.c.b16 %v1382, %v1378
      %v1463 = vpack.c.b16 %v1383, %v1379
      %v1464 = vpack.c.b16 %v1384, %v1380
      %v1465 = vpack.c.b16 %v1385, %v1381
      %v1466 = vpack.c.b16 %v1390, %v1386
      %v1467 = vpack.c.b16 %v1391, %v1387
      %v1468 = vpack.c.b16 %v1392, %v1388
      %v1469 = vpack.c.b16 %v1393, %v1389
      %v1470 = vpack.c.b16 %v1398, %v1394
      %v1471 = vpack.c.b16 %v1399, %v1395
      %v1472 = vpack.c.b16 %v1400, %v1396
      %v1473 = vpack.c.b16 %v1401, %v1397
      %v1474 = vpack.c.b16 %v1406, %v1402
      %v1475 = vpack.c.b16 %v1407, %v1403
      %v1476 = vpack.c.b16 %v1408, %v1404
      %v1477 = vpack.c.b16 %v1409, %v1405
      %v1478 = vpack.c.b16 %v1414, %v1410
      %v1479 = vpack.c.b16 %v1415, %v1411
      %v1480 = vpack.c.b16 %v1416, %v1412
      %v1481 = vpack.c.b16 %v1417, %v1413
      %1546 = vmatprep.subr.bf16.mxu0 %v1447
      %1547 = vmatpush1.bf16.msra.mxu0 %v1446
      %1548 = vmatprep.subr.bf16.mxu0 %v1443
      %1549 = vmatpush1.bf16.msra.mxu0 %v1442
      %1550 = vmatprep.subr.bf16.mxu0 %v1439
      %1551 = vmatpush1.bf16.msra.mxu0 %v1438
      %1552 = vmatprep.subr.bf16.mxu0 %v1435
      %1553 = vmatpush1.bf16.msra.mxu0 %v1434
      %1554 = vmatprep.subr.bf16.mxu0 %v1431
      %1555 = vmatpush1.bf16.msra.mxu0 %v1430
      %1556 = vmatprep.subr.bf16.mxu0 %v1427
      %1557 = vmatpush1.bf16.msra.mxu0 %v1426
      %1558 = vmatprep.subr.bf16.mxu0 %v1423
      %1559 = vmatpush1.bf16.msra.mxu0 %v1422
      %1560 = vmatprep.subr.bf16.mxu0 %v1419
      %1561 = vmatpush1.bf16.msra.mxu0 %v1418
      %1562 = vmatprep.subr.bf16.mxu0 %v1479
      %1563 = vmatpush2.bf16.msra.mxu0 %v1478
      %1564 = vmatprep.subr.bf16.mxu0 %v1475
      %1565 = vmatpush2.bf16.msra.mxu0 %v1474
      %1566 = vmatprep.subr.bf16.mxu0 %v1471
      %1567 = vmatpush2.bf16.msra.mxu0 %v1470
      %1568 = vmatprep.subr.bf16.mxu0 %v1467
      %1569 = vmatpush2.bf16.msra.mxu0 %v1466
      %1570 = vmatprep.subr.bf16.mxu0 %v1463
      %1571 = vmatpush2.bf16.msra.mxu0 %v1462
      %1572 = vmatprep.subr.bf16.mxu0 %v1459
      %1573 = vmatpush2.bf16.msra.mxu0 %v1458
      %1574 = vmatprep.subr.bf16.mxu0 %v1455
      %1575 = vmatpush2.bf16.msra.mxu0 %v1454
      %1576 = vmatprep.subr.bf16.mxu0 %v1451
      %1577 = vmatpush2.bf16.msra.mxu0 %v1450
      %1578 = vmatprep.mubr.bf16.mxu0 %v1160
      %1579 = vmatmul.mubr.bf16.gmra.mxu0 %v1155
      %v1580 = vpop.f32.mrf.mxu0
      %v1581 = vadd.f32 %v125, %v1580
      %v1582 = vpop.f32.mrf.mxu0
      %v1583 = vadd.f32 %v129, %v1582
      %v1584 = vpop.f32.mrf.mxu0
      %v1585 = vpop.f32.mrf.mxu0
      %1586 = vdwg.mxu0
      %1587 = vmatprep.subr.bf16.mxu0 %v1449
      %1588 = vmatpush1.bf16.msra.mxu0 %v1448
      %1589 = vmatprep.subr.bf16.mxu0 %v1445
      %1590 = vmatpush1.bf16.msra.mxu0 %v1444
      %1591 = vmatprep.subr.bf16.mxu0 %v1441
      %1592 = vmatpush1.bf16.msra.mxu0 %v1440
      %1593 = vmatprep.subr.bf16.mxu0 %v1437
      %1594 = vmatpush1.bf16.msra.mxu0 %v1436
      %1595 = vmatprep.subr.bf16.mxu0 %v1433
      %1596 = vmatpush1.bf16.msra.mxu0 %v1432
      %1597 = vmatprep.subr.bf16.mxu0 %v1429
      %1598 = vmatpush1.bf16.msra.mxu0 %v1428
      %1599 = vmatprep.subr.bf16.mxu0 %v1425
      %1600 = vmatpush1.bf16.msra.mxu0 %v1424
      %1601 = vmatprep.subr.bf16.mxu0 %v1421
      %1602 = vmatpush1.bf16.msra.mxu0 %v1420
      %1603 = vmatprep.subr.bf16.mxu0 %v1481
      %1604 = vmatpush2.bf16.msra.mxu0 %v1480
      %1605 = vmatprep.subr.bf16.mxu0 %v1477
      %1606 = vmatpush2.bf16.msra.mxu0 %v1476
      %1607 = vmatprep.subr.bf16.mxu0 %v1473
      %1608 = vmatpush2.bf16.msra.mxu0 %v1472
      %1609 = vmatprep.subr.bf16.mxu0 %v1469
      %1610 = vmatpush2.bf16.msra.mxu0 %v1468
      %1611 = vmatprep.subr.bf16.mxu0 %v1465
      %1612 = vmatpush2.bf16.msra.mxu0 %v1464
      %1613 = vmatprep.subr.bf16.mxu0 %v1461
      %1614 = vmatpush2.bf16.msra.mxu0 %v1460
      %1615 = vmatprep.subr.bf16.mxu0 %v1457
      %1616 = vmatpush2.bf16.msra.mxu0 %v1456
      %1617 = vmatprep.subr.bf16.mxu0 %v1453
      %1618 = vmatpush2.bf16.msra.mxu0 %v1452
      %1619 = vmatprep.mubr.bf16.mxu0 %v1160
      %1620 = vmatmul.mubr.bf16.gmra.mxu0 %v1155
      %v1621 = vpop.f32.mrf.mxu0
      %v1622 = vadd.f32 %v133, %v1621
      %v1623 = vpop.f32.mrf.mxu0
      %v1624 = vadd.f32 %v137, %v1623
      %v1625 = vpop.f32.mrf.mxu0
      %v1626 = vpop.f32.mrf.mxu0
      %1627 = vdwg.mxu0
      %v1628 = vxor.u32 %v1581, 2147483648
      %v1629 = vmul.f32 %v1628, 1.442695
      %v1630 = vpow.pop %v1629
      %v1631 = vadd.f32 %v1630, 1.0
      %v1632 = vrcp.pop %v1631
      %v1633 = vmul.f32 1.0, %v1632
      %v1634 = vxor.u32 %v1583, 2147483648
      %v1635 = vmul.f32 %v1634, 1.442695
      %v1636 = vpow.pop %v1635
      %v1637 = vadd.f32 %v1636, 1.0
      %v1638 = vrcp.pop %v1637
      %v1639 = vmul.f32 1.0, %v1638
      %v1640 = vtanh.pop %v1622
      %v1641 = vxor.u32 %v1624, 2147483648
      %v1642 = vmul.f32 %v1641, 1.442695
      %v1643 = vpow.pop %v1642
      %v1644 = vadd.f32 %v1643, 1.0
      %v1645 = vrcp.pop %v1644
      %v1646 = vmul.f32 1.0, %v1645
      %v1647 = vmul.f32 %v1639, %v1159
      %v1648 = vmul.f32 %v1633, %v1640
      %v1649 = vadd.f32 %v1647, %v1648
      %v1650 = vtanh.pop %v1649
      %v1651 = vmul.f32 %v1646, %v1650
      %1652 = vst [vmem:[%s1156] sm:$0xff] %v1651
      %1653 = vst [vmem:[%s1158] sm:$0xff] %v1649
      %v1654 = vpack.c.bf16 %v1651, %v1651
      %v1655 = vld [vmem:[#allocation4] sm:$0xf]
      %v1656 = vld [vmem:[#allocation4 + $0x4] sm:$0xf]
      %v1657 = vld [vmem:[#allocation4 + $0x8] sm:$0xf]
      %v1658 = vld [vmem:[#allocation4 + $0xc] sm:$0xf]
      %v1659 = vld [vmem:[#allocation4 + $0x10] sm:$0xf]
      %v1660 = vld [vmem:[#allocation4 + $0x14] sm:$0xf]
      %v1661 = vld [vmem:[#allocation4 + $0x18] sm:$0xf]
      %v1662 = vld [vmem:[#allocation4 + $0x1c] sm:$0xf]
      %v1663 = vld [vmem:[#allocation4 + $0x20] sm:$0xf]
      %v1664 = vld [vmem:[#allocation4 + $0x24] sm:$0xf]
      %v1665 = vld [vmem:[#allocation4 + $0x28] sm:$0xf]
      %v1666 = vld [vmem:[#allocation4 + $0x2c] sm:$0xf]
      %v1667 = vld [vmem:[#allocation4 + $0x30] sm:$0xf]
      %v1668 = vld [vmem:[#allocation4 + $0x34] sm:$0xf]
      %v1669 = vld [vmem:[#allocation4 + $0x38] sm:$0xf]
      %v1670 = vld [vmem:[#allocation4 + $0x3c] sm:$0xf]
      %v1671 = vld [vmem:[#allocation4 + $0x40] sm:$0xf]
      %v1672 = vld [vmem:[#allocation4 + $0x44] sm:$0xf]
      %v1673 = vld [vmem:[#allocation4 + $0x48] sm:$0xf]
      %v1674 = vld [vmem:[#allocation4 + $0x4c] sm:$0xf]
      %v1675 = vld [vmem:[#allocation4 + $0x50] sm:$0xf]
      %v1676 = vld [vmem:[#allocation4 + $0x54] sm:$0xf]
      %v1677 = vld [vmem:[#allocation4 + $0x58] sm:$0xf]
      %v1678 = vld [vmem:[#allocation4 + $0x5c] sm:$0xf]
      %v1679 = vld [vmem:[#allocation4 + $0x60] sm:$0xf]
      %v1680 = vld [vmem:[#allocation4 + $0x64] sm:$0xf]
      %v1681 = vld [vmem:[#allocation4 + $0x68] sm:$0xf]
      %v1682 = vld [vmem:[#allocation4 + $0x6c] sm:$0xf]
      %v1683 = vld [vmem:[#allocation4 + $0x70] sm:$0xf]
      %v1684 = vld [vmem:[#allocation4 + $0x74] sm:$0xf]
      %v1685 = vld [vmem:[#allocation4 + $0x78] sm:$0xf]
      %v1686 = vld [vmem:[#allocation4 + $0x7c] sm:$0xf]
      %v1687 = vld [vmem:[#allocation4 + $0x80] sm:$0xf]
      %v1688 = vld [vmem:[#allocation4 + $0x84] sm:$0xf]
      %v1689 = vld [vmem:[#allocation4 + $0x88] sm:$0xf]
      %v1690 = vld [vmem:[#allocation4 + $0x8c] sm:$0xf]
      %v1691 = vld [vmem:[#allocation4 + $0x90] sm:$0xf]
      %v1692 = vld [vmem:[#allocation4 + $0x94] sm:$0xf]
      %v1693 = vld [vmem:[#allocation4 + $0x98] sm:$0xf]
      %v1694 = vld [vmem:[#allocation4 + $0x9c] sm:$0xf]
      %v1695 = vld [vmem:[#allocation4 + $0xa0] sm:$0xf]
      %v1696 = vld [vmem:[#allocation4 + $0xa4] sm:$0xf]
      %v1697 = vld [vmem:[#allocation4 + $0xa8] sm:$0xf]
      %v1698 = vld [vmem:[#allocation4 + $0xac] sm:$0xf]
      %v1699 = vld [vmem:[#allocation4 + $0xb0] sm:$0xf]
      %v1700 = vld [vmem:[#allocation4 + $0xb4] sm:$0xf]
      %v1701 = vld [vmem:[#allocation4 + $0xb8] sm:$0xf]
      %v1702 = vld [vmem:[#allocation4 + $0xbc] sm:$0xf]
      %v1751 = vunpack.c.l.b16 %v1655
      %v1752 = vunpack.c.l.b16 %v1656
      %v1753 = vunpack.c.l.b16 %v1657
      %v1754 = vunpack.c.l.b16 %v1658
      %v1755 = vunpack.c.l.b16 %v1659
      %v1756 = vunpack.c.l.b16 %v1660
      %v1757 = vunpack.c.l.b16 %v1661
      %v1758 = vunpack.c.l.b16 %v1662
      %v1759 = vunpack.c.l.b16 %v1663
      %v1760 = vunpack.c.l.b16 %v1664
      %v1761 = vunpack.c.l.b16 %v1665
      %v1762 = vunpack.c.l.b16 %v1666
      %v1763 = vunpack.c.l.b16 %v1667
      %v1764 = vunpack.c.l.b16 %v1668
      %v1765 = vunpack.c.l.b16 %v1669
      %v1766 = vunpack.c.l.b16 %v1670
      %v1767 = vunpack.c.l.b16 %v1671
      %v1768 = vunpack.c.l.b16 %v1672
      %v1769 = vunpack.c.l.b16 %v1673
      %v1770 = vunpack.c.l.b16 %v1674
      %v1771 = vunpack.c.l.b16 %v1675
      %v1772 = vunpack.c.l.b16 %v1676
      %v1773 = vunpack.c.l.b16 %v1677
      %v1774 = vunpack.c.l.b16 %v1678
      %v1775 = vunpack.c.l.b16 %v1679
      %v1776 = vunpack.c.l.b16 %v1680
      %v1777 = vunpack.c.l.b16 %v1681
      %v1778 = vunpack.c.l.b16 %v1682
      %v1779 = vunpack.c.l.b16 %v1683
      %v1780 = vunpack.c.l.b16 %v1684
      %v1781 = vunpack.c.l.b16 %v1685
      %v1782 = vunpack.c.l.b16 %v1686
      %v1783 = vunpack.c.l.b16 %v1687
      %v1784 = vunpack.c.l.b16 %v1688
      %v1785 = vunpack.c.l.b16 %v1689
      %v1786 = vunpack.c.l.b16 %v1690
      %v1787 = vunpack.c.l.b16 %v1691
      %v1788 = vunpack.c.l.b16 %v1692
      %v1789 = vunpack.c.l.b16 %v1693
      %v1790 = vunpack.c.l.b16 %v1694
      %v1791 = vunpack.c.l.b16 %v1695
      %v1792 = vunpack.c.l.b16 %v1696
      %v1793 = vunpack.c.l.b16 %v1697
      %v1794 = vunpack.c.l.b16 %v1698
      %v1795 = vunpack.c.l.b16 %v1699
      %v1796 = vunpack.c.l.b16 %v1700
      %v1797 = vunpack.c.l.b16 %v1701
      %v1798 = vunpack.c.l.b16 %v1702
      %v1799 = vpack.c.b16 %v1752, %v1751
      %v1800 = vpack.c.b16 %v1754, %v1753
      %v1801 = vpack.c.b16 %v1756, %v1755
      %v1802 = vpack.c.b16 %v1758, %v1757
      %v1803 = vpack.c.b16 %v1760, %v1759
      %v1804 = vpack.c.b16 %v1762, %v1761
      %v1805 = vpack.c.b16 %v1764, %v1763
      %v1806 = vpack.c.b16 %v1766, %v1765
      %v1807 = vpack.c.b16 %v1768, %v1767
      %v1808 = vpack.c.b16 %v1770, %v1769
      %v1809 = vpack.c.b16 %v1772, %v1771
      %v1810 = vpack.c.b16 %v1774, %v1773
      %v1811 = vpack.c.b16 %v1776, %v1775
      %v1812 = vpack.c.b16 %v1778, %v1777
      %v1813 = vpack.c.b16 %v1780, %v1779
      %v1814 = vpack.c.b16 %v1782, %v1781
      %v1815 = vpack.c.b16 %v1784, %v1783
      %v1816 = vpack.c.b16 %v1786, %v1785
      %v1817 = vpack.c.b16 %v1788, %v1787
      %v1818 = vpack.c.b16 %v1790, %v1789
      %v1819 = vpack.c.b16 %v1792, %v1791
      %v1820 = vpack.c.b16 %v1794, %v1793
      %v1821 = vpack.c.b16 %v1796, %v1795
      %v1822 = vpack.c.b16 %v1798, %v1797
      %1847 = vmatprep.subr.bf16.mxu0 0
      %1848 = vmatpush1.bf16.msra.mxu0 %v1806
      %1849 = vmatprep.subr.bf16.mxu0 0
      %1850 = vmatpush1.bf16.msra.mxu0 %v1805
      %1851 = vmatprep.subr.bf16.mxu0 0
      %1852 = vmatpush1.bf16.msra.mxu0 %v1804
      %1853 = vmatprep.subr.bf16.mxu0 0
      %1854 = vmatpush1.bf16.msra.mxu0 %v1803
      %1855 = vmatprep.subr.bf16.mxu0 0
      %1856 = vmatpush1.bf16.msra.mxu0 %v1802
      %1857 = vmatprep.subr.bf16.mxu0 0
      %1858 = vmatpush1.bf16.msra.mxu0 %v1801
      %1859 = vmatprep.subr.bf16.mxu0 0
      %1860 = vmatpush1.bf16.msra.mxu0 %v1800
      %1861 = vmatprep.subr.bf16.mxu0 0
      %1862 = vmatpush1.bf16.msra.mxu0 %v1799
      %1863 = vmatprep.subr.bf16.mxu0 0
      %1864 = vmatpush2.bf16.msra.mxu0 %v1814
      %1865 = vmatprep.subr.bf16.mxu0 0
      %1866 = vmatpush2.bf16.msra.mxu0 %v1813
      %1867 = vmatprep.subr.bf16.mxu0 0
      %1868 = vmatpush2.bf16.msra.mxu0 %v1812
      %1869 = vmatprep.subr.bf16.mxu0 0
      %1870 = vmatpush2.bf16.msra.mxu0 %v1811
      %1871 = vmatprep.subr.bf16.mxu0 0
      %1872 = vmatpush2.bf16.msra.mxu0 %v1810
      %1873 = vmatprep.subr.bf16.mxu0 0
      %1874 = vmatpush2.bf16.msra.mxu0 %v1809
      %1875 = vmatprep.subr.bf16.mxu0 0
      %1876 = vmatpush2.bf16.msra.mxu0 %v1808
      %1877 = vmatprep.subr.bf16.mxu0 0
      %1878 = vmatpush2.bf16.msra.mxu0 %v1807
      %1879 = vmatprep.mubr.bf16.mxu0 %v1155
      %1880 = vmatmul.mubr.bf16.gmra.mxu0 %v656
      %v1881 = vpop.f32.mrf.mxu0
      %v1882 = vadd.f32 %v147, %v1881
      %v1883 = vpop.f32.mrf.mxu0
      %v1884 = vpop.f32.mrf.mxu0
      %v1885 = vpop.f32.mrf.mxu0
      %1886 = vdwg.mxu0
      %1887 = vmatprep.subr.bf16.mxu0 0
      %1888 = vmatpush1.bf16.msra.mxu0 %v1822
      %1889 = vmatprep.subr.bf16.mxu0 0
      %1890 = vmatpush1.bf16.msra.mxu0 %v1821
      %1891 = vmatprep.subr.bf16.mxu0 0
      %1892 = vmatpush1.bf16.msra.mxu0 %v1820
      %1893 = vmatprep.subr.bf16.mxu0 0
      %1894 = vmatpush1.bf16.msra.mxu0 %v1819
      %1895 = vmatprep.subr.bf16.mxu0 0
      %1896 = vmatpush1.bf16.msra.mxu0 %v1818
      %1897 = vmatprep.subr.bf16.mxu0 0
      %1898 = vmatpush1.bf16.msra.mxu0 %v1817
      %1899 = vmatprep.subr.bf16.mxu0 0
      %1900 = vmatpush1.bf16.msra.mxu0 %v1816
      %1901 = vmatprep.subr.bf16.mxu0 0
      %1902 = vmatpush1.bf16.msra.mxu0 %v1815
      %1903 = vmatprep.subr.bf16.mxu0 0
      %1904 = vmatpush2.bf16.msra.mxu0 0
      %1905 = vmatprep.subr.bf16.mxu0 0
      %1906 = vmatpush2.bf16.msra.mxu0 0
      %1907 = vmatprep.subr.bf16.mxu0 0
      %1908 = vmatpush2.bf16.msra.mxu0 0
      %1909 = vmatprep.subr.bf16.mxu0 0
      %1910 = vmatpush2.bf16.msra.mxu0 0
      %1911 = vmatprep.subr.bf16.mxu0 0
      %1912 = vmatpush2.bf16.msra.mxu0 0
      %1913 = vmatprep.subr.bf16.mxu0 0
      %1914 = vmatpush2.bf16.msra.mxu0 0
      %1915 = vmatprep.subr.bf16.mxu0 0
      %1916 = vmatpush2.bf16.msra.mxu0 0
      %1917 = vmatprep.subr.bf16.mxu0 0
      %1918 = vmatpush2.bf16.msra.mxu0 0
      %1919 = vmatprep.mubr.bf16.mxu0 0
      %1920 = vmatmul.mubr.bf16.gmra.mxu0 %v1654
      %v1921 = vpop.f32.mrf.mxu0
      %v1922 = vadd.f32 %v1882, %v1921
      %v1923 = vpop.f32.mrf.mxu0
      %v1924 = vpop.f32.mrf.mxu0
      %v1925 = vpop.f32.mrf.mxu0
      %1926 = vdwg.mxu0
      %s1927 = smul.u32 %s153, 8
      %s1928 = scalar_lea.vmem %s7, %s1927
      %1929 = vst [vmem:[%s1928] sm:$0xff] %v1922
    $region46: #{deepar_steps.1} parent=1 // loop_footer
      %s155 = sadd.s32 %s153, 1
    $region47: #{deepar_steps.1} parent=1 // loop_footer_branch
      %152 = sbr.rel target = $region43
    $region48: #{deepar_steps.1} parent=1 // loop_exit
      _
    // Predicated region
    $region49: #{deepar_steps.1} parent=1 // pred_check
      _
    $region50: #{deepar_steps.1} parent=1 // pred_check_branch
      %1931 = sbr.rel (0) target = $region52
    $region51: #{deepar_steps.1} parent=1 // pred_region
      _
    $region52: #{deepar_steps.1} parent=1 // pred_fallthru
      _
    // Predicated region
    $region53: #{deepar_steps.1} parent=1 // pred_check
      _
    $region54: #{deepar_steps.1} parent=1 // pred_check_branch
      %1933 = sbr.rel (0) target = $region56
    $region55: #{deepar_steps.1} parent=1 // pred_region
      _
    $region56: #{deepar_steps.1} parent=1 // pred_fallthru
      _
    // Predicated region
    $region57: #{deepar_steps.1} parent=1 // pred_check
      _
    $region58: #{deepar_steps.1} parent=1 // pred_check_branch
      %1935 = sbr.rel (0) target = $region60
    $region59: #{deepar_steps.1} parent=1 // pred_region
      _
    $region60: #{deepar_steps.1} parent=1 // pred_fallthru
      _
    // Predicated region
    $region61: #{deepar_steps.1} parent=1 // pred_check
      _
    $region62: #{deepar_steps.1} parent=1 // pred_check_branch
      %1937 = sbr.rel (0) target = $region64
    $region63: #{deepar_steps.1} parent=1 // pred_region
      _
    $region64: #{deepar_steps.1} parent=1 // pred_fallthru
      _
    // Predicated region
    $region65: #{deepar_steps.1} parent=1 // pred_check
      _
    $region66: #{deepar_steps.1} parent=1 // pred_check_branch
      %1939 = sbr.rel (0) target = $region68
    $region67: #{deepar_steps.1} parent=1 // pred_region
      _
    $region68: #{deepar_steps.1} parent=1 // pred_fallthru
      _
    // Predicated region
    $region69: #{deepar_steps.1} parent=1 // pred_check
      _
    $region70: #{deepar_steps.1} parent=1 // pred_check_branch
      %1941 = sbr.rel (0) target = $region72
    $region71: #{deepar_steps.1} parent=1 // pred_region
      _
    $region72: #{deepar_steps.1} parent=1 // pred_fallthru
      _
    %1942 = vsyncpa [#allocation3], 1
    %1943 = vsyncpa [#allocation5], 1

</llo_original>
